<compile_context>
chip_gen: v7x
topology: tpu7x:2x2x1
jax: 0.10.0
libtpu: 0.0.40
codegen_flags: <defaults>
</compile_context>

<pallas_src>
import functools
import math

import jax
import jax.numpy as jnp
from jax.experimental import pallas as pl
from jax.experimental.pallas import tpu as pltpu


# ----------------------------------------------------------------------------
# Pallas kernel: fused multi-headed self-attention for one (Bt, S, D) block.
# ----------------------------------------------------------------------------
def _self_mha_kernel(x_ref, wqkv_ref, bqkv_ref, wo_ref, bo_ref, o_ref,
                     *, heads, d_k):
    bt, s, d_model = x_ref.shape
    r = bt * s

    # Flatten (Bt, S) rows for the projections (leading-dim reshape only).
    x = x_ref[...].reshape(r, d_model)                        # bf16 (R, D)

    # Fused Q/K/V projection: single (R, D) x (D, 3D) matmul + bias + ReLU.
    qkv = jnp.dot(x, wqkv_ref[...], preferred_element_type=jnp.float32)
    qkv = jnp.maximum(qkv + bqkv_ref[...], 0.0)               # f32 (R, 3D)

    # 128-lane-aligned slices (D is a multiple of 128).  Fold 1/sqrt(d_k) into
    # q; keep softmax math f32 (v5e has no bf16 VPU/EUP), matmul operands bf16.
    q = (qkv[:, 0:d_model] * (1.0 / math.sqrt(d_k))).astype(jnp.bfloat16)
    k = qkv[:, d_model:2 * d_model].astype(jnp.bfloat16)
    v = qkv[:, 2 * d_model:3 * d_model].astype(jnp.bfloat16)

    # Head split: (R, D) -> (heads*Bt, S, d_k) so ONE batched einsum / softmax
    # sweep covers all heads (leading-axis concat + leading-dim reshapes only).
    def split_heads(t):
        return jnp.concatenate(
            [t[:, i * d_k:(i + 1) * d_k].reshape(bt, s, d_k)
             for i in range(heads)], axis=0)

    qh, kh, vh = split_heads(q), split_heads(k), split_heads(v)

    scores = jnp.einsum('bqd,bkd->bqk', qh, kh,
                        preferred_element_type=jnp.float32)   # (h*Bt, S, S)
    m = jnp.max(scores, axis=-1, keepdims=True)
    e = jnp.exp(scores - m)
    l = jnp.sum(e, axis=-1, keepdims=True)

    ctx = jnp.einsum('bqk,bkd->bqd', e.astype(jnp.bfloat16), vh,
                     preferred_element_type=jnp.float32)      # (h*Bt, S, d_k)
    # Softmax normalization on the EUP (vrcp), folded into the PV result.
    ctx = ctx * pl.reciprocal(l, approx=True)

    # Merge heads back onto the lane axis, then ONE (R, D) x (D, D) wo matmul.
    ctx = jnp.concatenate(
        [ctx[i * bt:(i + 1) * bt].reshape(r, d_k) for i in range(heads)],
        axis=-1)                                              # f32 (R, D)
    out = jnp.dot(ctx.astype(jnp.bfloat16), wo_ref[...],
                  preferred_element_type=jnp.float32)
    out = jnp.maximum(out + bo_ref[...], 0.0)                 # final Linear+ReLU
    o_ref[...] = out.reshape(bt, s, d_model).astype(o_ref.dtype)


# ----------------------------------------------------------------------------
# Wrapper helpers.
# ----------------------------------------------------------------------------
def _mha_cost_estimate(b, s, d_model, heads):
    mm_flops = 2 * b * s * d_model * d_model * 4        # qkv (3D wide) + out
    attn_flops = 2 * b * s * s * d_model * 2            # QK^T + PV (all heads)
    bytes_accessed = (b * s * d_model * 2               # x (bf16)
                      + 4 * d_model * d_model * 2       # weights (bf16)
                      + 4 * d_model * 4                 # biases (f32)
                      + b * s * d_model * 4)            # output (f32)
    return pl.CostEstimate(flops=int(mm_flops + attn_flops),
                           transcendentals=int(b * heads * s * s),
                           bytes_accessed=int(bytes_accessed))


def _mha_vmem_limit(bt, s, d_model, heads):
    d_k = d_model // heads
    r = bt * s
    # Grid-invariant weights/biases (constant index map) are fetched once.
    weights = 4 * d_model * d_model * 2 + 4 * d_model * 4
    act_io = 2 * (r * d_model * (2 + 4))                # x bf16 + out f32 (2x buf)
    qkv = r * 3 * d_model * (4 + 2)                     # f32 + bf16 copies
    scores = heads * bt * s * s * 4 * 2                 # scores + exp (f32)
    ctx = heads * r * d_k * (4 + 2) + r * d_model * (4 + 2)
    total = 2 * weights + act_io + qkv + scores + ctx
    try:
        cap = int(pltpu.get_tpu_info().vmem_capacity_bytes * 3 // 4)
    except Exception:                                   # noqa: BLE001
        cap = 48 << 20                                  # safe on v7x's 64 MiB
    return int(min(max(8 << 20, 2 * total), cap))


def _default_batch_block(n, s):
    """bt such that bt*S feeds >=128 MXU rows per grid step where possible.

    On multi-TensorCore chips (v7x) keep at least two grid steps so the
    "parallel" batch axis can shard across cores.
    """
    bt = min(n, max(1, 128 // max(1, s)))
    multi_tc = False
    try:
        multi_tc = "v7" in jax.devices()[0].device_kind.lower()
    except Exception:                                   # noqa: BLE001
        multi_tc = False
    if multi_tc:
        bt = min(bt, max(1, n // 2))
    while n % bt:
        bt -= 1
    return max(1, bt)


def prepare_mha_params(params):
    """Cast/concat the MHA weights once per forward (shared by both passes)."""
    wqkv = jnp.concatenate([params["wq"], params["wk"], params["wv"]],
                           axis=1).astype(jnp.bfloat16)        # (D, 3D)
    bqkv = jnp.concatenate([params["bq"], params["bk"], params["bv"]],
                           axis=1).astype(jnp.float32)         # (1, 3D)
    return dict(wqkv=wqkv, bqkv=bqkv,
                wo=params["wo"].astype(jnp.bfloat16),
                bo=params["bo"].astype(jnp.float32))


def mha_pallas(x, fused, *, heads, batch_block=None):
    """One MultiHeadedAttention self-attention pass: x is [B, S, d_model]."""
    b, s, d_model = x.shape
    assert d_model % heads == 0
    d_k = d_model // heads
    bt = batch_block if batch_block is not None else _default_batch_block(b, s)
    assert b % bt == 0

    kernel = functools.partial(_self_mha_kernel, heads=heads, d_k=d_k)

    act_spec = pl.BlockSpec((bt, s, d_model), lambda i: (i, 0, 0))
    # Weights / biases are grid-invariant (constant index map): the pipeliner
    # DMAs them once and keeps them resident across batch steps.
    wqkv_spec = pl.BlockSpec((d_model, 3 * d_model), lambda i: (0, 0))
    bqkv_spec = pl.BlockSpec((1, 3 * d_model), lambda i: (0, 0))
    wo_spec = pl.BlockSpec((d_model, d_model), lambda i: (0, 0))
    bo_spec = pl.BlockSpec((1, d_model), lambda i: (0, 0))

    return pl.pallas_call(
        kernel,
        out_shape=jax.ShapeDtypeStruct((b, s, d_model), x.dtype),
        grid_spec=pltpu.PrefetchScalarGridSpec(
            num_scalar_prefetch=0,
            grid=(b // bt,),
            in_specs=[act_spec, wqkv_spec, bqkv_spec, wo_spec, bo_spec],
            out_specs=pl.BlockSpec((bt, s, d_model), lambda i: (i, 0, 0)),
        ),
        compiler_params=pltpu.CompilerParams(
            dimension_semantics=("parallel",),
            vmem_limit_bytes=_mha_vmem_limit(bt, s, d_model, heads)),
        cost_estimate=_mha_cost_estimate(b, s, d_model, heads),
    )(x.astype(jnp.bfloat16), fused["wqkv"], fused["bqkv"],
      fused["wo"], fused["bo"])


# ----------------------------------------------------------------------------
# Full self_transformer forward (means / transposes / blends are XLA glue).
# ----------------------------------------------------------------------------
def self_transformer_forward(x, params, *, heads, batch_block=None):
    n, c, hh, ww = x.shape
    fused = prepare_mha_params(params)   # cast/concat once, shared by both passes

    # Pass 1: attention over the H axis (sequence = H, features = C).
    x1 = jnp.transpose(jnp.mean(x, axis=3), (0, 2, 1))            # (n, H, C)
    y1 = mha_pallas(x1, fused, heads=heads, batch_block=batch_block)
    y1 = jnp.transpose(y1, (0, 2, 1))[..., None]                  # (n, C, H, 1)
    x = (x + y1) * 0.5

    # Pass 2: attention over the W axis (sequence = W, features = C).
    x2 = jnp.transpose(jnp.mean(x, axis=2), (0, 2, 1))            # (n, W, C)
    y2 = mha_pallas(x2, fused, heads=heads, batch_block=batch_block)
    y2 = jnp.transpose(y2, (0, 2, 1))[:, :, None, :]              # (n, C, 1, W)
    x = (x + y2) * 0.5
    return x


# ----------------------------------------------------------------------------
# Pure-JAX f32 reference mirroring the PyTorch forward (eval mode).
# ----------------------------------------------------------------------------
def _mha_reference(x, params, *, heads):
    b, s, d_model = x.shape
    d_k = d_model // heads

    def proj(inp, w, bias):
        return jax.nn.relu(inp @ w + bias)

    q = proj(x, params["wq"], params["bq"]).reshape(b, s, heads, d_k).transpose(0, 2, 1, 3)
    k = proj(x, params["wk"], params["bk"]).reshape(b, s, heads, d_k).transpose(0, 2, 1, 3)
    v = proj(x, params["wv"], params["bv"]).reshape(b, s, heads, d_k).transpose(0, 2, 1, 3)

    scores = jnp.einsum('bhqd,bhkd->bhqk', q, k) / math.sqrt(d_k)
    p = jax.nn.softmax(scores, axis=-1)
    ctx = jnp.einsum('bhqk,bhkd->bhqd', p, v)
    ctx = ctx.transpose(0, 2, 1, 3).reshape(b, s, heads * d_k)
    return jax.nn.relu(ctx @ params["wo"] + params["bo"])


def _self_transformer_reference(x, params, *, heads):
    x1 = jnp.transpose(jnp.mean(x, axis=3), (0, 2, 1))
    x1 = _mha_reference(x1, params, heads=heads)
    x1 = jnp.transpose(x1, (0, 2, 1))[..., None]
    x = (x + x1) / 2
    x2 = jnp.transpose(jnp.mean(x, axis=2), (0, 2, 1))
    x2 = _mha_reference(x2, params, heads=heads)
    x2 = jnp.transpose(x2, (0, 2, 1))[:, :, None, :]
    x = (x + x2) / 2
    return x


# ----------------------------------------------------------------------------
# Deterministic synthetic parameters (PyTorch Linear init, pre-transposed).
# ----------------------------------------------------------------------------
def make_params(key, d_model, dtype=jnp.float32):
    ks = jax.random.split(key, 8)
    bound = 1.0 / math.sqrt(d_model)

    def w(k_):   # nn.Linear weight is (out, in); stored transposed (in, out).
        return jax.random.uniform(k_, (d_model, d_model), dtype, -bound, bound)

    def bias(k_):
        return jax.random.uniform(k_, (1, d_model), dtype, -bound, bound)

    return dict(wq=w(ks[0]), wk=w(ks[1]), wv=w(ks[2]), wo=w(ks[3]),
                bq=bias(ks[4]), bk=bias(ks[5]), bv=bias(ks[6]), bo=bias(ks[7]))


if __name__ == "__main__":
    # x: [N, C, H, W]; d_model == C (chosen lane-dense = 128), heads = 4.
    # NOTE: at this demo size the run is dominated by launch/glue overhead; the
    # kernel-internal optimizations become measurable at larger N/H/W.
    n, c, hh, ww = 2, 128, 16, 16
    heads = 4

    root = jax.random.PRNGKey(0)
    k_x, k_p = jax.random.split(root)
    x = jax.random.normal(k_x, (n, c, hh, ww), jnp.float32)
    params = make_params(k_p, c)

    fwd = jax.jit(functools.partial(self_transformer_forward, heads=heads))
    out = jax.block_until_ready(fwd(x, params))

    ref = _self_transformer_reference(x, params, heads=heads)
    assert out.shape == (n, c, hh, ww)
    max_err = float(jnp.max(jnp.abs(out - ref)))
    # bf16 MXU operands + approx reciprocal -> slightly loosened tolerance.
    assert jnp.allclose(out, ref, atol=2e-2, rtol=2e-2), (
        f"kernel != reference (max abs err {max_err})")
    print("KERNEL_OK")
</pallas_src>

<mosaic_0001>
module attributes {stable_mosaic.version = 11 : i64} {
  func.func @_self_mha_kernel(%arg0: i32, %arg1: memref<2x16x128xbf16, #tpu.memory_space<vmem>>, %arg2: memref<128x384xbf16, #tpu.memory_space<vmem>>, %arg3: memref<1x384xf32, #tpu.memory_space<vmem>>, %arg4: memref<128x128xbf16, #tpu.memory_space<vmem>>, %arg5: memref<1x128xf32, #tpu.memory_space<vmem>>, %arg6: memref<2x16x128xf32, #tpu.memory_space<vmem>>) attributes {dimension_semantics = [#tpu.dimension_semantics<parallel>], iteration_bounds = array<i64: 1>, scalar_prefetch = 0 : i64, scratch_operands = 0 : i64, tpu.core_type = #tpu.core_type<tc>, window_params = [{transform_indices = @transform_0, window_bounds = array<i64: 2, 16, 128>}, {pipeline_mode = #tpu.pipeline_mode<synchronous>, transform_indices = @transform_1, window_bounds = array<i64: 128, 384>}, {pipeline_mode = #tpu.pipeline_mode<synchronous>, transform_indices = @transform_2, window_bounds = array<i64: 1, 384>}, {pipeline_mode = #tpu.pipeline_mode<synchronous>, transform_indices = @transform_3, window_bounds = array<i64: 128, 128>}, {pipeline_mode = #tpu.pipeline_mode<synchronous>, transform_indices = @transform_4, window_bounds = array<i64: 1, 128>}, {transform_indices = @transform_5, window_bounds = array<i64: 2, 16, 128>}]} {
    %c0 = arith.constant 0 : index
    %c0_0 = arith.constant 0 : index
    %c0_1 = arith.constant 0 : index
    %0 = vector.load %arg1[%c0, %c0_0, %c0_1] : memref<2x16x128xbf16, #tpu.memory_space<vmem>>, vector<2x16x128xbf16>
    %1 = vector.shape_cast %0 : vector<2x16x128xbf16> to vector<32x128xbf16>
    %c0_2 = arith.constant 0 : index
    %c0_3 = arith.constant 0 : index
    %2 = vector.load %arg2[%c0_2, %c0_3] : memref<128x384xbf16, #tpu.memory_space<vmem>>, vector<128x384xbf16>
    %cst = arith.constant dense<0.000000e+00> : vector<32x384xf32>
    %3 = tpu.matmul %1, %2, %cst {dimension_numbers = #tpu.dot_dimension_numbers<[1], [0], [0], [1], [0, 0, 1, 1], [], []>} : vector<32x128xbf16>, vector<128x384xbf16>, vector<32x384xf32> -> vector<32x384xf32>
    %c0_4 = arith.constant 0 : index
    %c0_5 = arith.constant 0 : index
    %4 = vector.load %arg3[%c0_4, %c0_5] : memref<1x384xf32, #tpu.memory_space<vmem>>, vector<1x384xf32>
    %5 = vector.broadcast %4 : vector<1x384xf32> to vector<32x384xf32>
    %6 = arith.addf %3, %5 : vector<32x384xf32>
    %cst_6 = arith.constant 0.000000e+00 : f32
    %7 = vector.broadcast %cst_6 : f32 to vector<32x384xf32>
    %8 = arith.maximumf %6, %7 : vector<32x384xf32>
    %9 = vector.extract_strided_slice %8 {offsets = [0, 0], sizes = [32, 128], strides = [1, 1]} : vector<32x384xf32> to vector<32x128xf32>
    %cst_7 = arith.constant 0.176776692 : f32
    %10 = vector.broadcast %cst_7 : f32 to vector<32x128xf32>
    %11 = arith.mulf %9, %10 : vector<32x128xf32>
    %12 = arith.truncf %11 : vector<32x128xf32> to vector<32x128xbf16>
    %13 = vector.extract_strided_slice %8 {offsets = [0, 128], sizes = [32, 128], strides = [1, 1]} : vector<32x384xf32> to vector<32x128xf32>
    %14 = arith.truncf %13 : vector<32x128xf32> to vector<32x128xbf16>
    %15 = vector.extract_strided_slice %8 {offsets = [0, 256], sizes = [32, 128], strides = [1, 1]} : vector<32x384xf32> to vector<32x128xf32>
    %16 = arith.truncf %15 : vector<32x128xf32> to vector<32x128xbf16>
    %17 = vector.extract_strided_slice %12 {offsets = [0, 0], sizes = [32, 32], strides = [1, 1]} : vector<32x128xbf16> to vector<32x32xbf16>
    %18 = vector.shape_cast %17 : vector<32x32xbf16> to vector<2x16x32xbf16>
    %19 = vector.extract_strided_slice %12 {offsets = [0, 32], sizes = [32, 32], strides = [1, 1]} : vector<32x128xbf16> to vector<32x32xbf16>
    %20 = vector.shape_cast %19 : vector<32x32xbf16> to vector<2x16x32xbf16>
    %21 = vector.extract_strided_slice %12 {offsets = [0, 64], sizes = [32, 32], strides = [1, 1]} : vector<32x128xbf16> to vector<32x32xbf16>
    %22 = vector.shape_cast %21 : vector<32x32xbf16> to vector<2x16x32xbf16>
    %23 = vector.extract_strided_slice %12 {offsets = [0, 96], sizes = [32, 32], strides = [1, 1]} : vector<32x128xbf16> to vector<32x32xbf16>
    %24 = vector.shape_cast %23 : vector<32x32xbf16> to vector<2x16x32xbf16>
    %25 = tpu.concatenate %18, %20, %22, %24 in 0 : vector<2x16x32xbf16>, vector<2x16x32xbf16>, vector<2x16x32xbf16>, vector<2x16x32xbf16> -> vector<8x16x32xbf16>
    %26 = vector.extract_strided_slice %14 {offsets = [0, 0], sizes = [32, 32], strides = [1, 1]} : vector<32x128xbf16> to vector<32x32xbf16>
    %27 = vector.shape_cast %26 : vector<32x32xbf16> to vector<2x16x32xbf16>
    %28 = vector.extract_strided_slice %14 {offsets = [0, 32], sizes = [32, 32], strides = [1, 1]} : vector<32x128xbf16> to vector<32x32xbf16>
    %29 = vector.shape_cast %28 : vector<32x32xbf16> to vector<2x16x32xbf16>
    %30 = vector.extract_strided_slice %14 {offsets = [0, 64], sizes = [32, 32], strides = [1, 1]} : vector<32x128xbf16> to vector<32x32xbf16>
    %31 = vector.shape_cast %30 : vector<32x32xbf16> to vector<2x16x32xbf16>
    %32 = vector.extract_strided_slice %14 {offsets = [0, 96], sizes = [32, 32], strides = [1, 1]} : vector<32x128xbf16> to vector<32x32xbf16>
    %33 = vector.shape_cast %32 : vector<32x32xbf16> to vector<2x16x32xbf16>
    %34 = tpu.concatenate %27, %29, %31, %33 in 0 : vector<2x16x32xbf16>, vector<2x16x32xbf16>, vector<2x16x32xbf16>, vector<2x16x32xbf16> -> vector<8x16x32xbf16>
    %35 = vector.extract_strided_slice %16 {offsets = [0, 0], sizes = [32, 32], strides = [1, 1]} : vector<32x128xbf16> to vector<32x32xbf16>
    %36 = vector.shape_cast %35 : vector<32x32xbf16> to vector<2x16x32xbf16>
    %37 = vector.extract_strided_slice %16 {offsets = [0, 32], sizes = [32, 32], strides = [1, 1]} : vector<32x128xbf16> to vector<32x32xbf16>
    %38 = vector.shape_cast %37 : vector<32x32xbf16> to vector<2x16x32xbf16>
    %39 = vector.extract_strided_slice %16 {offsets = [0, 64], sizes = [32, 32], strides = [1, 1]} : vector<32x128xbf16> to vector<32x32xbf16>
    %40 = vector.shape_cast %39 : vector<32x32xbf16> to vector<2x16x32xbf16>
    %41 = vector.extract_strided_slice %16 {offsets = [0, 96], sizes = [32, 32], strides = [1, 1]} : vector<32x128xbf16> to vector<32x32xbf16>
    %42 = vector.shape_cast %41 : vector<32x32xbf16> to vector<2x16x32xbf16>
    %43 = tpu.concatenate %36, %38, %40, %42 in 0 : vector<2x16x32xbf16>, vector<2x16x32xbf16>, vector<2x16x32xbf16>, vector<2x16x32xbf16> -> vector<8x16x32xbf16>
    "tpu.trace_start"() <{level = 10 : i32, message = "bqd,bkd->bqk"}> : () -> ()
    %cst_8 = arith.constant dense<0.000000e+00> : vector<8x16x16xf32>
    %44 = tpu.matmul %25, %34, %cst_8 {dimension_numbers = #tpu.dot_dimension_numbers<[2], [2], [1], [1], [0, 0, 0, 1, 1, 1], [0], [0]>} : vector<8x16x32xbf16>, vector<8x16x32xbf16>, vector<8x16x16xf32> -> vector<8x16x16xf32>
    "tpu.trace_stop"() : () -> ()
    %cst_9 = arith.constant dense<0xFF800000> : vector<8x16xf32>
    %45 = vector.multi_reduction <maximumf>, %44, %cst_9 [2] : vector<8x16x16xf32> to vector<8x16xf32>
    %46 = vector.shape_cast %45 : vector<8x16xf32> to vector<8x16x1xf32>
    %47 = vector.broadcast %46 : vector<8x16x1xf32> to vector<8x16x16xf32>
    %48 = arith.subf %44, %47 : vector<8x16x16xf32>
    %49 = math.exp %48 : vector<8x16x16xf32>
    %cst_10 = arith.constant dense<0.000000e+00> : vector<8x16xf32>
    %50 = vector.multi_reduction <add>, %49, %cst_10 [2] : vector<8x16x16xf32> to vector<8x16xf32>
    %51 = vector.shape_cast %50 : vector<8x16xf32> to vector<8x16x1xf32>
    %52 = arith.truncf %49 : vector<8x16x16xf32> to vector<8x16x16xbf16>
    "tpu.trace_start"() <{level = 10 : i32, message = "bqk,bkd->bqd"}> : () -> ()
    %cst_11 = arith.constant dense<0.000000e+00> : vector<8x16x32xf32>
    %53 = tpu.matmul %52, %43, %cst_11 {dimension_numbers = #tpu.dot_dimension_numbers<[2], [1], [1], [2], [0, 0, 0, 1, 1, 2], [0], [0]>} : vector<8x16x16xbf16>, vector<8x16x32xbf16>, vector<8x16x32xf32> -> vector<8x16x32xf32>
    "tpu.trace_stop"() : () -> ()
    %54 = tpu.reciprocal %51 {approx = true} : vector<8x16x1xf32> -> vector<8x16x1xf32>
    %55 = vector.broadcast %54 : vector<8x16x1xf32> to vector<8x16x32xf32>
    %56 = arith.mulf %53, %55 : vector<8x16x32xf32>
    %57 = vector.extract_strided_slice %56 {offsets = [0, 0, 0], sizes = [2, 16, 32], strides = [1, 1, 1]} : vector<8x16x32xf32> to vector<2x16x32xf32>
    %58 = vector.shape_cast %57 : vector<2x16x32xf32> to vector<32x32xf32>
    %59 = vector.extract_strided_slice %56 {offsets = [2, 0, 0], sizes = [2, 16, 32], strides = [1, 1, 1]} : vector<8x16x32xf32> to vector<2x16x32xf32>
    %60 = vector.shape_cast %59 : vector<2x16x32xf32> to vector<32x32xf32>
    %61 = vector.extract_strided_slice %56 {offsets = [4, 0, 0], sizes = [2, 16, 32], strides = [1, 1, 1]} : vector<8x16x32xf32> to vector<2x16x32xf32>
    %62 = vector.shape_cast %61 : vector<2x16x32xf32> to vector<32x32xf32>
    %63 = vector.extract_strided_slice %56 {offsets = [6, 0, 0], sizes = [2, 16, 32], strides = [1, 1, 1]} : vector<8x16x32xf32> to vector<2x16x32xf32>
    %64 = vector.shape_cast %63 : vector<2x16x32xf32> to vector<32x32xf32>
    %65 = tpu.concatenate %58, %60, %62, %64 in 1 : vector<32x32xf32>, vector<32x32xf32>, vector<32x32xf32>, vector<32x32xf32> -> vector<32x128xf32>
    %66 = arith.truncf %65 : vector<32x128xf32> to vector<32x128xbf16>
    %c0_12 = arith.constant 0 : index
    %c0_13 = arith.constant 0 : index
    %67 = vector.load %arg4[%c0_12, %c0_13] : memref<128x128xbf16, #tpu.memory_space<vmem>>, vector<128x128xbf16>
    %cst_14 = arith.constant dense<0.000000e+00> : vector<32x128xf32>
    %68 = tpu.matmul %66, %67, %cst_14 {dimension_numbers = #tpu.dot_dimension_numbers<[1], [0], [0], [1], [0, 0, 1, 1], [], []>} : vector<32x128xbf16>, vector<128x128xbf16>, vector<32x128xf32> -> vector<32x128xf32>
    %c0_15 = arith.constant 0 : index
    %c0_16 = arith.constant 0 : index
    %69 = vector.load %arg5[%c0_15, %c0_16] : memref<1x128xf32, #tpu.memory_space<vmem>>, vector<1x128xf32>
    %70 = vector.broadcast %69 : vector<1x128xf32> to vector<32x128xf32>
    %71 = arith.addf %68, %70 : vector<32x128xf32>
    %cst_17 = arith.constant 0.000000e+00 : f32
    %72 = vector.broadcast %cst_17 : f32 to vector<32x128xf32>
    %73 = arith.maximumf %71, %72 : vector<32x128xf32>
    %74 = vector.shape_cast %73 : vector<32x128xf32> to vector<2x16x128xf32>
    %c0_18 = arith.constant 0 : index
    %c0_19 = arith.constant 0 : index
    %c0_20 = arith.constant 0 : index
    %75 = vector.load %arg6[%c0_18, %c0_19, %c0_20] : memref<2x16x128xf32, #tpu.memory_space<vmem>>, vector<2x16x128xf32>
    tpu.vector_store %arg6[%c0_18, %c0_19, %c0_20], %74 {strides = array<i32>} : memref<2x16x128xf32, #tpu.memory_space<vmem>>, vector<2x16x128xf32>,
    return
  }
  func.func @transform_0(%arg0: i32) -> (i32, i32, i32) {
    %c0_i32 = arith.constant 0 : i32
    %c0_i32_0 = arith.constant 0 : i32
    %c0_i32_1 = arith.constant 0 : i32
    return %arg0, %c0_i32, %c0_i32_0 : i32, i32, i32
  }
  func.func @transform_1(%arg0: i32) -> (i32, i32) {
    %c0_i32 = arith.constant 0 : i32
    %c0_i32_0 = arith.constant 0 : i32
    %c0_i32_1 = arith.constant 0 : i32
    return %c0_i32, %c0_i32_0 : i32, i32
  }
  func.func @transform_2(%arg0: i32) -> (i32, i32) {
    %c0_i32 = arith.constant 0 : i32
    %c0_i32_0 = arith.constant 0 : i32
    %c0_i32_1 = arith.constant 0 : i32
    return %c0_i32, %c0_i32_0 : i32, i32
  }
  func.func @transform_3(%arg0: i32) -> (i32, i32) {
    %c0_i32 = arith.constant 0 : i32
    %c0_i32_0 = arith.constant 0 : i32
    %c0_i32_1 = arith.constant 0 : i32
    return %c0_i32, %c0_i32_0 : i32, i32
  }
  func.func @transform_4(%arg0: i32) -> (i32, i32) {
    %c0_i32 = arith.constant 0 : i32
    %c0_i32_0 = arith.constant 0 : i32
    %c0_i32_1 = arith.constant 0 : i32
    return %c0_i32, %c0_i32_0 : i32, i32
  }
  func.func @transform_5(%arg0: i32) -> (i32, i32, i32) {
    %c0_i32 = arith.constant 0 : i32
    %c0_i32_0 = arith.constant 0 : i32
    %c0_i32_1 = arith.constant 0 : i32
    return %arg0, %c0_i32, %c0_i32_0 : i32, i32, i32
  }
}

</mosaic_0001>

<llo_original>
// kernel: self_transformer_forward.2
$region0: #{self_transformer_forward.2}
  #allocation0 [shape = 'u32[]', space=smem, size = 0x4, offset = 0x4, fixed_abs, tag = 'smem constant byte address 0x4 - core index']
  #allocation1 [shape = 'u32[144,128]{1,0:T(1,128)}', space=vmem, size = 0x12000, scoped, tag = 'internal scratch']
  %s0 = inlined_call_operand.vmem [shape: bf16[2,16,128], index: 0, kind: input, shape index: {}]
  %s1 = inlined_call_operand.vmem [shape: bf16[128,384], index: 1, kind: input, shape index: {}]
  %s2 = inlined_call_operand.vmem [shape: f32[1,384], index: 2, kind: input, shape index: {}]
  %s3 = inlined_call_operand.vmem [shape: bf16[128,128], index: 3, kind: input, shape index: {}]
  %s4 = inlined_call_operand.vmem [shape: f32[1,128], index: 4, kind: input, shape index: {}]
  %s5 = inlined_call_operand.vmem [shape: f32[2,16,128], index: 5, kind: output, shape index: {}]
  %s6 = sld [smem:[#allocation0]]
  $region30: #{self_transformer_forward.2} parent=0
    _
  %s8 = ssub.s32 1, %s6
  %s9 = scalar_select 0, %s8, %s6
  // Predicated region
  $region2: #{self_transformer_forward.2} parent=0 // pred_check
    _
  $region3: #{self_transformer_forward.2} parent=0 // pred_check_branch
    %11 = sbr.rel (0) target = $region5
  $region4: #{self_transformer_forward.2} parent=0 // pred_region
    _
  $region5: #{self_transformer_forward.2} parent=0 // pred_fallthru
    _
  // Predicated region
  $region6: #{self_transformer_forward.2} parent=0 // pred_check
    _
  $region7: #{self_transformer_forward.2} parent=0 // pred_check_branch
    %13 = sbr.rel (0) target = $region9
  $region8: #{self_transformer_forward.2} parent=0 // pred_region
    _
  $region9: #{self_transformer_forward.2} parent=0 // pred_fallthru
    _
  // Predicated region
  $region10: #{self_transformer_forward.2} parent=0 // pred_check
    _
  $region11: #{self_transformer_forward.2} parent=0 // pred_check_branch
    %15 = sbr.rel (0) target = $region13
  $region12: #{self_transformer_forward.2} parent=0 // pred_region
    _
  $region13: #{self_transformer_forward.2} parent=0 // pred_fallthru
    _
  // Predicated region
  $region14: #{self_transformer_forward.2} parent=0 // pred_check
    _
  $region15: #{self_transformer_forward.2} parent=0 // pred_check_branch
    %17 = sbr.rel (0) target = $region17
  $region16: #{self_transformer_forward.2} parent=0 // pred_region
    _
  $region17: #{self_transformer_forward.2} parent=0 // pred_fallthru
    _
  // Predicated region
  $region18: #{self_transformer_forward.2} parent=0 // pred_check
    _
  $region19: #{self_transformer_forward.2} parent=0 // pred_check_branch
    %19 = sbr.rel (0) target = $region21
  $region20: #{self_transformer_forward.2} parent=0 // pred_region
    _
  $region21: #{self_transformer_forward.2} parent=0 // pred_fallthru
    _
  %v21 = vld [vmem:[%s0] sm:$0xf]
  %v22 = vld [vmem:[%s0 + $0x4] sm:$0xf]
  %v23 = vld [vmem:[%s0 + $0x8] sm:$0xf]
  %v24 = vld [vmem:[%s0 + $0xc] sm:$0xf]
  %v25 = vld [vmem:[%s1] sm:$0xff]
  %v26 = vld [vmem:[%s1 + $0x8] sm:$0xf]
  %v27 = vld [vmem:[%s1 + $0xc] sm:$0xff]
  %v28 = vld [vmem:[%s1 + $0x14] sm:$0xf]
  %v29 = vld [vmem:[%s1 + $0x18] sm:$0xff]
  %v30 = vld [vmem:[%s1 + $0x20] sm:$0xf]
  %v31 = vld [vmem:[%s1 + $0x24] sm:$0xff]
  %v32 = vld [vmem:[%s1 + $0x2c] sm:$0xf]
  %v33 = vld [vmem:[%s1 + $0x30] sm:$0xff]
  %v34 = vld [vmem:[%s1 + $0x38] sm:$0xf]
  %v35 = vld [vmem:[%s1 + $0x3c] sm:$0xff]
  %v36 = vld [vmem:[%s1 + $0x44] sm:$0xf]
  %v37 = vld [vmem:[%s1 + $0x48] sm:$0xff]
  %v38 = vld [vmem:[%s1 + $0x50] sm:$0xf]
  %v39 = vld [vmem:[%s1 + $0x54] sm:$0xff]
  %v40 = vld [vmem:[%s1 + $0x5c] sm:$0xf]
  %v41 = vld [vmem:[%s1 + $0x60] sm:$0xff]
  %v42 = vld [vmem:[%s1 + $0x68] sm:$0xf]
  %v43 = vld [vmem:[%s1 + $0x6c] sm:$0xff]
  %v44 = vld [vmem:[%s1 + $0x74] sm:$0xf]
  %v45 = vld [vmem:[%s1 + $0x78] sm:$0xff]
  %v46 = vld [vmem:[%s1 + $0x80] sm:$0xf]
  %v47 = vld [vmem:[%s1 + $0x84] sm:$0xff]
  %v48 = vld [vmem:[%s1 + $0x8c] sm:$0xf]
  %v49 = vld [vmem:[%s1 + $0x90] sm:$0xff]
  %v50 = vld [vmem:[%s1 + $0x98] sm:$0xf]
  %v51 = vld [vmem:[%s1 + $0x9c] sm:$0xff]
  %v52 = vld [vmem:[%s1 + $0xa4] sm:$0xf]
  %v53 = vld [vmem:[%s1 + $0xa8] sm:$0xff]
  %v54 = vld [vmem:[%s1 + $0xb0] sm:$0xf]
  %v55 = vld [vmem:[%s1 + $0xb4] sm:$0xff]
  %v56 = vld [vmem:[%s1 + $0xbc] sm:$0xf]
  %v57 = vld [vmem:[%s2] sm:$0x7]
  %v59 = vlaneseq
  %v60 = vshrl.u32 %v59, 7
  %v61 = vsub.s32 0, %v60
  %v62 = vrot.slane %v57, %v61
  %v63 = vlaneseq
  %v64 = vshrl.u32 %v63, 7
  %v65 = vsub.s32 1, %v64
  %v66 = vrot.slane %v57, %v65
  %v67 = vlaneseq
  %v68 = vshrl.u32 %v67, 7
  %v69 = vsub.s32 2, %v68
  %v70 = vrot.slane %v57, %v69
  %v78 = vunpack.c.l.b16 %v21
  %v79 = vunpack.c.l.b16 %v22
  %v80 = vunpack.c.l.b16 %v23
  %v81 = vunpack.c.l.b16 %v24
  %v82 = vpack.c.b16 %v79, %v78
  %v83 = vpack.c.b16 %v81, %v80
  %v118 = vunpack.c.l.b16 %v25
  %v119 = vunpack.c.h.b16 %v25
  %v120 = vunpack.c.l.b16 %v26
  %v121 = vunpack.c.l.b16 %v27
  %v122 = vunpack.c.h.b16 %v27
  %v123 = vunpack.c.l.b16 %v28
  %v124 = vunpack.c.l.b16 %v29
  %v125 = vunpack.c.h.b16 %v29
  %v126 = vunpack.c.l.b16 %v30
  %v127 = vunpack.c.l.b16 %v31
  %v128 = vunpack.c.h.b16 %v31
  %v129 = vunpack.c.l.b16 %v32
  %v130 = vunpack.c.l.b16 %v33
  %v131 = vunpack.c.h.b16 %v33
  %v132 = vunpack.c.l.b16 %v34
  %v133 = vunpack.c.l.b16 %v35
  %v134 = vunpack.c.h.b16 %v35
  %v135 = vunpack.c.l.b16 %v36
  %v136 = vunpack.c.l.b16 %v37
  %v137 = vunpack.c.h.b16 %v37
  %v138 = vunpack.c.l.b16 %v38
  %v139 = vunpack.c.l.b16 %v39
  %v140 = vunpack.c.h.b16 %v39
  %v141 = vunpack.c.l.b16 %v40
  %v142 = vunpack.c.l.b16 %v41
  %v143 = vunpack.c.h.b16 %v41
  %v144 = vunpack.c.l.b16 %v42
  %v145 = vunpack.c.l.b16 %v43
  %v146 = vunpack.c.h.b16 %v43
  %v147 = vunpack.c.l.b16 %v44
  %v148 = vunpack.c.l.b16 %v45
  %v149 = vunpack.c.h.b16 %v45
  %v150 = vunpack.c.l.b16 %v46
  %v151 = vunpack.c.l.b16 %v47
  %v152 = vunpack.c.h.b16 %v47
  %v153 = vunpack.c.l.b16 %v48
  %v154 = vunpack.c.l.b16 %v49
  %v155 = vunpack.c.h.b16 %v49
  %v156 = vunpack.c.l.b16 %v50
  %v157 = vunpack.c.l.b16 %v51
  %v158 = vunpack.c.h.b16 %v51
  %v159 = vunpack.c.l.b16 %v52
  %v160 = vunpack.c.l.b16 %v53
  %v161 = vunpack.c.h.b16 %v53
  %v162 = vunpack.c.l.b16 %v54
  %v163 = vunpack.c.l.b16 %v55
  %v164 = vunpack.c.h.b16 %v55
  %v165 = vunpack.c.l.b16 %v56
  %v166 = vpack.c.b16 %v121, %v118
  %v167 = vpack.c.b16 %v122, %v119
  %v168 = vpack.c.b16 %v123, %v120
  %v169 = vpack.c.b16 %v127, %v124
  %v170 = vpack.c.b16 %v128, %v125
  %v171 = vpack.c.b16 %v129, %v126
  %v172 = vpack.c.b16 %v133, %v130
  %v173 = vpack.c.b16 %v134, %v131
  %v174 = vpack.c.b16 %v135, %v132
  %v175 = vpack.c.b16 %v139, %v136
  %v176 = vpack.c.b16 %v140, %v137
  %v177 = vpack.c.b16 %v141, %v138
  %v178 = vpack.c.b16 %v145, %v142
  %v179 = vpack.c.b16 %v146, %v143
  %v180 = vpack.c.b16 %v147, %v144
  %v181 = vpack.c.b16 %v151, %v148
  %v182 = vpack.c.b16 %v152, %v149
  %v183 = vpack.c.b16 %v153, %v150
  %v184 = vpack.c.b16 %v157, %v154
  %v185 = vpack.c.b16 %v158, %v155
  %v186 = vpack.c.b16 %v159, %v156
  %v187 = vpack.c.b16 %v163, %v160
  %v188 = vpack.c.b16 %v164, %v161
  %v189 = vpack.c.b16 %v165, %v162
  %214 = vmatprep.subr.bf16.mxu0 %v167
  %215 = vmatpush1.bf16.msra.mxu0 %v166
  %216 = vmatprep.subr.bf16.mxu0 %v170
  %217 = vmatpush1.bf16.msra.mxu0 %v169
  %218 = vmatprep.subr.bf16.mxu0 %v173
  %219 = vmatpush1.bf16.msra.mxu0 %v172
  %220 = vmatprep.subr.bf16.mxu0 %v176
  %221 = vmatpush1.bf16.msra.mxu0 %v175
  %222 = vmatprep.subr.bf16.mxu0 %v179
  %223 = vmatpush1.bf16.msra.mxu0 %v178
  %224 = vmatprep.subr.bf16.mxu0 %v182
  %225 = vmatpush1.bf16.msra.mxu0 %v181
  %226 = vmatprep.subr.bf16.mxu0 %v185
  %227 = vmatpush1.bf16.msra.mxu0 %v184
  %228 = vmatprep.subr.bf16.mxu0 %v188
  %229 = vmatpush1.bf16.msra.mxu0 %v187
  %230 = vmatprep.subr.bf16.mxu0 0
  %231 = vmatpush1.bf16.msra.mxu0 0
  %232 = vmatprep.subr.bf16.mxu0 0
  %233 = vmatpush1.bf16.msra.mxu0 0
  %234 = vmatprep.subr.bf16.mxu0 0
  %235 = vmatpush1.bf16.msra.mxu0 0
  %236 = vmatprep.subr.bf16.mxu0 0
  %237 = vmatpush1.bf16.msra.mxu0 0
  %238 = vmatprep.subr.bf16.mxu0 0
  %239 = vmatpush1.bf16.msra.mxu0 0
  %240 = vmatprep.subr.bf16.mxu0 0
  %241 = vmatpush1.bf16.msra.mxu0 0
  %242 = vmatprep.subr.bf16.mxu0 0
  %243 = vmatpush1.bf16.msra.mxu0 0
  %244 = vmatprep.subr.bf16.mxu0 0
  %245 = vmatpush1.bf16.msra.mxu0 0
  %246 = vmatprep.mubr.bf16.mxu0 0
  %247 = vmatmul.mubr.bf16.gmra.mrb[0].mxu0 %v82
  %v248 = vpop.f32.mrb[0].mxu0
  %v249 = vadd.f32 %v62, %v248
  %v250 = vpop.f32.mrb[0].mxu0
  %v251 = vadd.f32 %v66, %v250
  %v252 = vpop.f32.mrb[0].mxu0
  %v253 = vadd.f32 %v62, %v252
  %v254 = vpop.f32.mrb[0].mxu0
  %v255 = vadd.f32 %v66, %v254
  %256 = vmatprep.mubr.bf16.mxu0 0
  %257 = vmatmul.mubr.bf16.gmra.mrb[0].mxu0 %v83
  %v258 = vpop.f32.mrb[0].mxu0
  %v259 = vadd.f32 %v62, %v258
  %v260 = vpop.f32.mrb[0].mxu0
  %v261 = vadd.f32 %v66, %v260
  %v262 = vpop.f32.mrb[0].mxu0
  %v263 = vadd.f32 %v62, %v262
  %v264 = vpop.f32.mrb[0].mxu0
  %v265 = vadd.f32 %v66, %v264
  %266 = vdwg.mxu0
  %267 = vmatprep.subr.bf16.mxu0 0
  %268 = vmatpush1.bf16.msra.mxu0 %v168
  %269 = vmatprep.subr.bf16.mxu0 0
  %270 = vmatpush1.bf16.msra.mxu0 %v171
  %271 = vmatprep.subr.bf16.mxu0 0
  %272 = vmatpush1.bf16.msra.mxu0 %v174
  %273 = vmatprep.subr.bf16.mxu0 0
  %274 = vmatpush1.bf16.msra.mxu0 %v177
  %275 = vmatprep.subr.bf16.mxu0 0
  %276 = vmatpush1.bf16.msra.mxu0 %v180
  %277 = vmatprep.subr.bf16.mxu0 0
  %278 = vmatpush1.bf16.msra.mxu0 %v183
  %279 = vmatprep.subr.bf16.mxu0 0
  %280 = vmatpush1.bf16.msra.mxu0 %v186
  %281 = vmatprep.subr.bf16.mxu0 0
  %282 = vmatpush1.bf16.msra.mxu0 %v189
  %283 = vmatprep.subr.bf16.mxu0 0
  %284 = vmatpush1.bf16.msra.mxu0 0
  %285 = vmatprep.subr.bf16.mxu0 0
  %286 = vmatpush1.bf16.msra.mxu0 0
  %287 = vmatprep.subr.bf16.mxu0 0
  %288 = vmatpush1.bf16.msra.mxu0 0
  %289 = vmatprep.subr.bf16.mxu0 0
  %290 = vmatpush1.bf16.msra.mxu0 0
  %291 = vmatprep.subr.bf16.mxu0 0
  %292 = vmatpush1.bf16.msra.mxu0 0
  %293 = vmatprep.subr.bf16.mxu0 0
  %294 = vmatpush1.bf16.msra.mxu0 0
  %295 = vmatprep.subr.bf16.mxu0 0
  %296 = vmatpush1.bf16.msra.mxu0 0
  %297 = vmatprep.subr.bf16.mxu0 0
  %298 = vmatpush1.bf16.msra.mxu0 0
  %299 = vmatprep.mubr.bf16.mxu0 0
  %300 = vmatmul.mubr.bf16.gmra.mrb[0].mxu0 %v82
  %v301 = vpop.f32.mrb[0].mxu0
  %v302 = vadd.f32 %v70, %v301
  %v303 = vpop.f32.mrb[0].mxu0
  %v304 = vpop.f32.mrb[0].mxu0
  %v305 = vadd.f32 %v70, %v304
  %v306 = vpop.f32.mrb[0].mxu0
  %307 = vmatprep.mubr.bf16.mxu0 0
  %308 = vmatmul.mubr.bf16.gmra.mrb[0].mxu0 %v83
  %v309 = vpop.f32.mrb[0].mxu0
  %v310 = vadd.f32 %v70, %v309
  %v311 = vpop.f32.mrb[0].mxu0
  %v312 = vpop.f32.mrb[0].mxu0
  %v313 = vadd.f32 %v70, %v312
  %v314 = vpop.f32.mrb[0].mxu0
  %315 = vdwg.mxu0
  %v316 = vmax.f32 %v249, 0.0
  %v317 = vmax.f32 %v251, 0.0
  %v318 = vmax.f32 %v302, 0.0
  %v319 = vmax.f32 %v253, 0.0
  %v320 = vmax.f32 %v255, 0.0
  %v321 = vmax.f32 %v305, 0.0
  %v322 = vmax.f32 %v259, 0.0
  %v323 = vmax.f32 %v261, 0.0
  %v324 = vmax.f32 %v310, 0.0
  %v325 = vmax.f32 %v263, 0.0
  %v326 = vmax.f32 %v265, 0.0
  %v327 = vmax.f32 %v313, 0.0
  %v328 = vmul.f32 %v316, 0.17677669
  %v329 = vmul.f32 %v319, 0.17677669
  %v330 = vmul.f32 %v322, 0.17677669
  %v331 = vmul.f32 %v325, 0.17677669
  %v332 = vpack.c.bf16 %v329, %v328
  %v333 = vpack.c.bf16 %v331, %v330
  %v334 = vpack.c.bf16 %v320, %v317
  %v335 = vpack.c.bf16 %v326, %v323
  %v336 = vpack.c.bf16 %v321, %v318
  %v337 = vpack.c.bf16 %v327, %v324
  %340 = vrot.lane.b32.xlu0 %v332, 96
  %v341 = vpop.permute.xlu0 %340
  %342 = vrot.lane.b32.xlu0 %v333, 96
  %v343 = vpop.permute.xlu0 %342
  %344 = vrot.lane.b32.xlu0 %v332, 64
  %v345 = vpop.permute.xlu0 %344
  %346 = vrot.lane.b32.xlu0 %v333, 64
  %v347 = vpop.permute.xlu0 %346
  %348 = vrot.lane.b32.xlu0 %v332, 32
  %v349 = vpop.permute.xlu0 %348
  %350 = vrot.lane.b32.xlu0 %v333, 32
  %v351 = vpop.permute.xlu0 %350
  %354 = vrot.lane.b32.xlu0 %v334, 96
  %v355 = vpop.permute.xlu0 %354
  %356 = vrot.lane.b32.xlu0 %v335, 96
  %v357 = vpop.permute.xlu0 %356
  %358 = vrot.lane.b32.xlu0 %v334, 64
  %v359 = vpop.permute.xlu0 %358
  %360 = vrot.lane.b32.xlu0 %v335, 64
  %v361 = vpop.permute.xlu0 %360
  %362 = vrot.lane.b32.xlu0 %v334, 32
  %v363 = vpop.permute.xlu0 %362
  %364 = vrot.lane.b32.xlu0 %v335, 32
  %v365 = vpop.permute.xlu0 %364
  %368 = vrot.lane.b32.xlu0 %v336, 96
  %v369 = vpop.permute.xlu0 %368
  %370 = vrot.lane.b32.xlu0 %v337, 96
  %v371 = vpop.permute.xlu0 %370
  %374 = vrot.lane.b32.xlu0 %v336, 64
  %v375 = vpop.permute.xlu0 %374
  %376 = vrot.lane.b32.xlu0 %v337, 64
  %v377 = vpop.permute.xlu0 %376
  %380 = vrot.lane.b32.xlu0 %v336, 32
  %v381 = vpop.permute.xlu0 %380
  %382 = vrot.lane.b32.xlu0 %v337, 32
  %v383 = vpop.permute.xlu0 %382
  %vm386 = vcmask 261120
  %v388 = vsel %vm386, %v332, 0
  %v391 = vsel %vm386, %v334, 0
  %393 = vmatprep.subr.bf16.mxu0 0
  %394 = vmatpush1.bf16.xpose.msra.mxu0 %v391
  %395 = vmatprep.subr.bf16.mxu0 0
  %396 = vmatpush1.bf16.xpose.msra.mxu0 0
  %397 = vmatprep.subr.bf16.mxu0 0
  %398 = vmatpush1.bf16.xpose.msra.mxu0 0
  %399 = vmatprep.subr.bf16.mxu0 0
  %400 = vmatpush1.bf16.xpose.msra.mxu0 0
  %401 = vmatprep.subr.bf16.mxu0 0
  %402 = vmatpush1.bf16.xpose.msra.mxu0 0
  %403 = vmatprep.subr.bf16.mxu0 0
  %404 = vmatpush1.bf16.xpose.msra.mxu0 0
  %405 = vmatprep.subr.bf16.mxu0 0
  %406 = vmatpush1.bf16.xpose.msra.mxu0 0
  %407 = vmatprep.subr.bf16.mxu0 0
  %408 = vmatpush1.bf16.xpose.msra.mxu0 0
  %409 = vmatprep.subr.bf16.mxu0 0
  %410 = vmatpush1.bf16.xpose.msra.mxu0 0
  %411 = vmatprep.subr.bf16.mxu0 0
  %412 = vmatpush1.bf16.xpose.msra.mxu0 0
  %413 = vmatprep.subr.bf16.mxu0 0
  %414 = vmatpush1.bf16.xpose.msra.mxu0 0
  %415 = vmatprep.subr.bf16.mxu0 0
  %416 = vmatpush1.bf16.xpose.msra.mxu0 0
  %417 = vmatprep.subr.bf16.mxu0 0
  %418 = vmatpush1.bf16.xpose.msra.mxu0 0
  %419 = vmatprep.subr.bf16.mxu0 0
  %420 = vmatpush1.bf16.xpose.msra.mxu0 0
  %421 = vmatprep.subr.bf16.mxu0 0
  %422 = vmatpush1.bf16.xpose.msra.mxu0 0
  %423 = vmatprep.subr.bf16.mxu0 0
  %424 = vmatpush1.bf16.xpose.msra.mxu0 0
  %425 = vmatprep.mubr.bf16.mxu0 0
  %426 = vmatmul.mubr.bf16.gmra.mrb[0].mxu0 %v388
  %v427 = vpop.f32.mrb[0].mxu0
  %v428 = vadd.f32 0.0, %v427
  %v429 = vpop.f32.mrb[0].mxu0
  %v430 = vpop.f32.mrb[0].mxu0
  %v431 = vadd.f32 0.0, %v430
  %v432 = vpop.f32.mrb[0].mxu0
  %433 = vdwg.mxu0
  %v435 = vsel %vm386, %v333, 0
  %v438 = vsel %vm386, %v335, 0
  %440 = vmatprep.subr.bf16.mxu0 0
  %441 = vmatpush1.bf16.xpose.msra.mxu0 %v438
  %442 = vmatprep.subr.bf16.mxu0 0
  %443 = vmatpush1.bf16.xpose.msra.mxu0 0
  %444 = vmatprep.subr.bf16.mxu0 0
  %445 = vmatpush1.bf16.xpose.msra.mxu0 0
  %446 = vmatprep.subr.bf16.mxu0 0
  %447 = vmatpush1.bf16.xpose.msra.mxu0 0
  %448 = vmatprep.subr.bf16.mxu0 0
  %449 = vmatpush1.bf16.xpose.msra.mxu0 0
  %450 = vmatprep.subr.bf16.mxu0 0
  %451 = vmatpush1.bf16.xpose.msra.mxu0 0
  %452 = vmatprep.subr.bf16.mxu0 0
  %453 = vmatpush1.bf16.xpose.msra.mxu0 0
  %454 = vmatprep.subr.bf16.mxu0 0
  %455 = vmatpush1.bf16.xpose.msra.mxu0 0
  %456 = vmatprep.subr.bf16.mxu0 0
  %457 = vmatpush1.bf16.xpose.msra.mxu0 0
  %458 = vmatprep.subr.bf16.mxu0 0
  %459 = vmatpush1.bf16.xpose.msra.mxu0 0
  %460 = vmatprep.subr.bf16.mxu0 0
  %461 = vmatpush1.bf16.xpose.msra.mxu0 0
  %462 = vmatprep.subr.bf16.mxu0 0
  %463 = vmatpush1.bf16.xpose.msra.mxu0 0
  %464 = vmatprep.subr.bf16.mxu0 0
  %465 = vmatpush1.bf16.xpose.msra.mxu0 0
  %466 = vmatprep.subr.bf16.mxu0 0
  %467 = vmatpush1.bf16.xpose.msra.mxu0 0
  %468 = vmatprep.subr.bf16.mxu0 0
  %469 = vmatpush1.bf16.xpose.msra.mxu0 0
  %470 = vmatprep.subr.bf16.mxu0 0
  %471 = vmatpush1.bf16.xpose.msra.mxu0 0
  %472 = vmatprep.mubr.bf16.mxu0 0
  %473 = vmatmul.mubr.bf16.gmra.mrb[0].mxu0 %v435
  %v474 = vpop.f32.mrb[0].mxu0
  %v475 = vadd.f32 0.0, %v474
  %v476 = vpop.f32.mrb[0].mxu0
  %v477 = vpop.f32.mrb[0].mxu0
  %v478 = vadd.f32 0.0, %v477
  %v479 = vpop.f32.mrb[0].mxu0
  %480 = vdwg.mxu0
  %v482 = vsel %vm386, %v341, 0
  %v485 = vsel %vm386, %v355, 0
  %487 = vmatprep.subr.bf16.mxu0 0
  %488 = vmatpush1.bf16.xpose.msra.mxu0 %v485
  %489 = vmatprep.subr.bf16.mxu0 0
  %490 = vmatpush1.bf16.xpose.msra.mxu0 0
  %491 = vmatprep.subr.bf16.mxu0 0
  %492 = vmatpush1.bf16.xpose.msra.mxu0 0
  %493 = vmatprep.subr.bf16.mxu0 0
  %494 = vmatpush1.bf16.xpose.msra.mxu0 0
  %495 = vmatprep.subr.bf16.mxu0 0
  %496 = vmatpush1.bf16.xpose.msra.mxu0 0
  %497 = vmatprep.subr.bf16.mxu0 0
  %498 = vmatpush1.bf16.xpose.msra.mxu0 0
  %499 = vmatprep.subr.bf16.mxu0 0
  %500 = vmatpush1.bf16.xpose.msra.mxu0 0
  %501 = vmatprep.subr.bf16.mxu0 0
  %502 = vmatpush1.bf16.xpose.msra.mxu0 0
  %503 = vmatprep.subr.bf16.mxu0 0
  %504 = vmatpush1.bf16.xpose.msra.mxu0 0
  %505 = vmatprep.subr.bf16.mxu0 0
  %506 = vmatpush1.bf16.xpose.msra.mxu0 0
  %507 = vmatprep.subr.bf16.mxu0 0
  %508 = vmatpush1.bf16.xpose.msra.mxu0 0
  %509 = vmatprep.subr.bf16.mxu0 0
  %510 = vmatpush1.bf16.xpose.msra.mxu0 0
  %511 = vmatprep.subr.bf16.mxu0 0
  %512 = vmatpush1.bf16.xpose.msra.mxu0 0
  %513 = vmatprep.subr.bf16.mxu0 0
  %514 = vmatpush1.bf16.xpose.msra.mxu0 0
  %515 = vmatprep.subr.bf16.mxu0 0
  %516 = vmatpush1.bf16.xpose.msra.mxu0 0
  %517 = vmatprep.subr.bf16.mxu0 0
  %518 = vmatpush1.bf16.xpose.msra.mxu0 0
  %519 = vmatprep.mubr.bf16.mxu0 0
  %520 = vmatmul.mubr.bf16.gmra.mrb[0].mxu0 %v482
  %v521 = vpop.f32.mrb[0].mxu0
  %v522 = vadd.f32 0.0, %v521
  %v523 = vpop.f32.mrb[0].mxu0
  %v524 = vpop.f32.mrb[0].mxu0
  %v525 = vadd.f32 0.0, %v524
  %v526 = vpop.f32.mrb[0].mxu0
  %527 = vdwg.mxu0
  %v529 = vsel %vm386, %v343, 0
  %v532 = vsel %vm386, %v357, 0
  %534 = vmatprep.subr.bf16.mxu0 0
  %535 = vmatpush1.bf16.xpose.msra.mxu0 %v532
  %536 = vmatprep.subr.bf16.mxu0 0
  %537 = vmatpush1.bf16.xpose.msra.mxu0 0
  %538 = vmatprep.subr.bf16.mxu0 0
  %539 = vmatpush1.bf16.xpose.msra.mxu0 0
  %540 = vmatprep.subr.bf16.mxu0 0
  %541 = vmatpush1.bf16.xpose.msra.mxu0 0
  %542 = vmatprep.subr.bf16.mxu0 0
  %543 = vmatpush1.bf16.xpose.msra.mxu0 0
  %544 = vmatprep.subr.bf16.mxu0 0
  %545 = vmatpush1.bf16.xpose.msra.mxu0 0
  %546 = vmatprep.subr.bf16.mxu0 0
  %547 = vmatpush1.bf16.xpose.msra.mxu0 0
  %548 = vmatprep.subr.bf16.mxu0 0
  %549 = vmatpush1.bf16.xpose.msra.mxu0 0
  %550 = vmatprep.subr.bf16.mxu0 0
  %551 = vmatpush1.bf16.xpose.msra.mxu0 0
  %552 = vmatprep.subr.bf16.mxu0 0
  %553 = vmatpush1.bf16.xpose.msra.mxu0 0
  %554 = vmatprep.subr.bf16.mxu0 0
  %555 = vmatpush1.bf16.xpose.msra.mxu0 0
  %556 = vmatprep.subr.bf16.mxu0 0
  %557 = vmatpush1.bf16.xpose.msra.mxu0 0
  %558 = vmatprep.subr.bf16.mxu0 0
  %559 = vmatpush1.bf16.xpose.msra.mxu0 0
  %560 = vmatprep.subr.bf16.mxu0 0
  %561 = vmatpush1.bf16.xpose.msra.mxu0 0
  %562 = vmatprep.subr.bf16.mxu0 0
  %563 = vmatpush1.bf16.xpose.msra.mxu0 0
  %564 = vmatprep.subr.bf16.mxu0 0
  %565 = vmatpush1.bf16.xpose.msra.mxu0 0
  %566 = vmatprep.mubr.bf16.mxu0 0
  %567 = vmatmul.mubr.bf16.gmra.mrb[0].mxu0 %v529
  %v568 = vpop.f32.mrb[0].mxu0
  %v569 = vadd.f32 0.0, %v568
  %v570 = vpop.f32.mrb[0].mxu0
  %v571 = vpop.f32.mrb[0].mxu0
  %v572 = vadd.f32 0.0, %v571
  %v573 = vpop.f32.mrb[0].mxu0
  %574 = vdwg.mxu0
  %v576 = vsel %vm386, %v345, 0
  %v579 = vsel %vm386, %v359, 0
  %581 = vmatprep.subr.bf16.mxu0 0
  %582 = vmatpush1.bf16.xpose.msra.mxu0 %v579
  %583 = vmatprep.subr.bf16.mxu0 0
  %584 = vmatpush1.bf16.xpose.msra.mxu0 0
  %585 = vmatprep.subr.bf16.mxu0 0
  %586 = vmatpush1.bf16.xpose.msra.mxu0 0
  %587 = vmatprep.subr.bf16.mxu0 0
  %588 = vmatpush1.bf16.xpose.msra.mxu0 0
  %589 = vmatprep.subr.bf16.mxu0 0
  %590 = vmatpush1.bf16.xpose.msra.mxu0 0
  %591 = vmatprep.subr.bf16.mxu0 0
  %592 = vmatpush1.bf16.xpose.msra.mxu0 0
  %593 = vmatprep.subr.bf16.mxu0 0
  %594 = vmatpush1.bf16.xpose.msra.mxu0 0
  %595 = vmatprep.subr.bf16.mxu0 0
  %596 = vmatpush1.bf16.xpose.msra.mxu0 0
  %597 = vmatprep.subr.bf16.mxu0 0
  %598 = vmatpush1.bf16.xpose.msra.mxu0 0
  %599 = vmatprep.subr.bf16.mxu0 0
  %600 = vmatpush1.bf16.xpose.msra.mxu0 0
  %601 = vmatprep.subr.bf16.mxu0 0
  %602 = vmatpush1.bf16.xpose.msra.mxu0 0
  %603 = vmatprep.subr.bf16.mxu0 0
  %604 = vmatpush1.bf16.xpose.msra.mxu0 0
  %605 = vmatprep.subr.bf16.mxu0 0
  %606 = vmatpush1.bf16.xpose.msra.mxu0 0
  %607 = vmatprep.subr.bf16.mxu0 0
  %608 = vmatpush1.bf16.xpose.msra.mxu0 0
  %609 = vmatprep.subr.bf16.mxu0 0
  %610 = vmatpush1.bf16.xpose.msra.mxu0 0
  %611 = vmatprep.subr.bf16.mxu0 0
  %612 = vmatpush1.bf16.xpose.msra.mxu0 0
  %613 = vmatprep.mubr.bf16.mxu0 0
  %614 = vmatmul.mubr.bf16.gmra.mrb[0].mxu0 %v576
  %v615 = vpop.f32.mrb[0].mxu0
  %v616 = vadd.f32 0.0, %v615
  %v617 = vpop.f32.mrb[0].mxu0
  %v618 = vpop.f32.mrb[0].mxu0
  %v619 = vadd.f32 0.0, %v618
  %v620 = vpop.f32.mrb[0].mxu0
  %621 = vdwg.mxu0
  %v623 = vsel %vm386, %v347, 0
  %v626 = vsel %vm386, %v361, 0
  %628 = vmatprep.subr.bf16.mxu0 0
  %629 = vmatpush1.bf16.xpose.msra.mxu0 %v626
  %630 = vmatprep.subr.bf16.mxu0 0
  %631 = vmatpush1.bf16.xpose.msra.mxu0 0
  %632 = vmatprep.subr.bf16.mxu0 0
  %633 = vmatpush1.bf16.xpose.msra.mxu0 0
  %634 = vmatprep.subr.bf16.mxu0 0
  %635 = vmatpush1.bf16.xpose.msra.mxu0 0
  %636 = vmatprep.subr.bf16.mxu0 0
  %637 = vmatpush1.bf16.xpose.msra.mxu0 0
  %638 = vmatprep.subr.bf16.mxu0 0
  %639 = vmatpush1.bf16.xpose.msra.mxu0 0
  %640 = vmatprep.subr.bf16.mxu0 0
  %641 = vmatpush1.bf16.xpose.msra.mxu0 0
  %642 = vmatprep.subr.bf16.mxu0 0
  %643 = vmatpush1.bf16.xpose.msra.mxu0 0
  %644 = vmatprep.subr.bf16.mxu0 0
  %645 = vmatpush1.bf16.xpose.msra.mxu0 0
  %646 = vmatprep.subr.bf16.mxu0 0
  %647 = vmatpush1.bf16.xpose.msra.mxu0 0
  %648 = vmatprep.subr.bf16.mxu0 0
  %649 = vmatpush1.bf16.xpose.msra.mxu0 0
  %650 = vmatprep.subr.bf16.mxu0 0
  %651 = vmatpush1.bf16.xpose.msra.mxu0 0
  %652 = vmatprep.subr.bf16.mxu0 0
  %653 = vmatpush1.bf16.xpose.msra.mxu0 0
  %654 = vmatprep.subr.bf16.mxu0 0
  %655 = vmatpush1.bf16.xpose.msra.mxu0 0
  %656 = vmatprep.subr.bf16.mxu0 0
  %657 = vmatpush1.bf16.xpose.msra.mxu0 0
  %658 = vmatprep.subr.bf16.mxu0 0
  %659 = vmatpush1.bf16.xpose.msra.mxu0 0
  %660 = vmatprep.mubr.bf16.mxu0 0
  %661 = vmatmul.mubr.bf16.gmra.mrb[0].mxu0 %v623
  %v662 = vpop.f32.mrb[0].mxu0
  %v663 = vadd.f32 0.0, %v662
  %v664 = vpop.f32.mrb[0].mxu0
  %v665 = vpop.f32.mrb[0].mxu0
  %v666 = vadd.f32 0.0, %v665
  %v667 = vpop.f32.mrb[0].mxu0
  %668 = vdwg.mxu0
  %v670 = vsel %vm386, %v349, 0
  %v673 = vsel %vm386, %v363, 0
  %675 = vmatprep.subr.bf16.mxu0 0
  %676 = vmatpush1.bf16.xpose.msra.mxu0 %v673
  %677 = vmatprep.subr.bf16.mxu0 0
  %678 = vmatpush1.bf16.xpose.msra.mxu0 0
  %679 = vmatprep.subr.bf16.mxu0 0
  %680 = vmatpush1.bf16.xpose.msra.mxu0 0
  %681 = vmatprep.subr.bf16.mxu0 0
  %682 = vmatpush1.bf16.xpose.msra.mxu0 0
  %683 = vmatprep.subr.bf16.mxu0 0
  %684 = vmatpush1.bf16.xpose.msra.mxu0 0
  %685 = vmatprep.subr.bf16.mxu0 0
  %686 = vmatpush1.bf16.xpose.msra.mxu0 0
  %687 = vmatprep.subr.bf16.mxu0 0
  %688 = vmatpush1.bf16.xpose.msra.mxu0 0
  %689 = vmatprep.subr.bf16.mxu0 0
  %690 = vmatpush1.bf16.xpose.msra.mxu0 0
  %691 = vmatprep.subr.bf16.mxu0 0
  %692 = vmatpush1.bf16.xpose.msra.mxu0 0
  %693 = vmatprep.subr.bf16.mxu0 0
  %694 = vmatpush1.bf16.xpose.msra.mxu0 0
  %695 = vmatprep.subr.bf16.mxu0 0
  %696 = vmatpush1.bf16.xpose.msra.mxu0 0
  %697 = vmatprep.subr.bf16.mxu0 0
  %698 = vmatpush1.bf16.xpose.msra.mxu0 0
  %699 = vmatprep.subr.bf16.mxu0 0
  %700 = vmatpush1.bf16.xpose.msra.mxu0 0
  %701 = vmatprep.subr.bf16.mxu0 0
  %702 = vmatpush1.bf16.xpose.msra.mxu0 0
  %703 = vmatprep.subr.bf16.mxu0 0
  %704 = vmatpush1.bf16.xpose.msra.mxu0 0
  %705 = vmatprep.subr.bf16.mxu0 0
  %706 = vmatpush1.bf16.xpose.msra.mxu0 0
  %707 = vmatprep.mubr.bf16.mxu0 0
  %708 = vmatmul.mubr.bf16.gmra.mrb[0].mxu0 %v670
  %v709 = vpop.f32.mrb[0].mxu0
  %v710 = vadd.f32 0.0, %v709
  %v711 = vpop.f32.mrb[0].mxu0
  %v712 = vpop.f32.mrb[0].mxu0
  %v713 = vadd.f32 0.0, %v712
  %v714 = vpop.f32.mrb[0].mxu0
  %715 = vdwg.mxu0
  %v717 = vsel %vm386, %v351, 0
  %v720 = vsel %vm386, %v365, 0
  %722 = vmatprep.subr.bf16.mxu0 0
  %723 = vmatpush1.bf16.xpose.msra.mxu0 %v720
  %724 = vmatprep.subr.bf16.mxu0 0
  %725 = vmatpush1.bf16.xpose.msra.mxu0 0
  %726 = vmatprep.subr.bf16.mxu0 0
  %727 = vmatpush1.bf16.xpose.msra.mxu0 0
  %728 = vmatprep.subr.bf16.mxu0 0
  %729 = vmatpush1.bf16.xpose.msra.mxu0 0
  %730 = vmatprep.subr.bf16.mxu0 0
  %731 = vmatpush1.bf16.xpose.msra.mxu0 0
  %732 = vmatprep.subr.bf16.mxu0 0
  %733 = vmatpush1.bf16.xpose.msra.mxu0 0
  %734 = vmatprep.subr.bf16.mxu0 0
  %735 = vmatpush1.bf16.xpose.msra.mxu0 0
  %736 = vmatprep.subr.bf16.mxu0 0
  %737 = vmatpush1.bf16.xpose.msra.mxu0 0
  %738 = vmatprep.subr.bf16.mxu0 0
  %739 = vmatpush1.bf16.xpose.msra.mxu0 0
  %740 = vmatprep.subr.bf16.mxu0 0
  %741 = vmatpush1.bf16.xpose.msra.mxu0 0
  %742 = vmatprep.subr.bf16.mxu0 0
  %743 = vmatpush1.bf16.xpose.msra.mxu0 0
  %744 = vmatprep.subr.bf16.mxu0 0
  %745 = vmatpush1.bf16.xpose.msra.mxu0 0
  %746 = vmatprep.subr.bf16.mxu0 0
  %747 = vmatpush1.bf16.xpose.msra.mxu0 0
  %748 = vmatprep.subr.bf16.mxu0 0
  %749 = vmatpush1.bf16.xpose.msra.mxu0 0
  %750 = vmatprep.subr.bf16.mxu0 0
  %751 = vmatpush1.bf16.xpose.msra.mxu0 0
  %752 = vmatprep.subr.bf16.mxu0 0
  %753 = vmatpush1.bf16.xpose.msra.mxu0 0
  %754 = vmatprep.mubr.bf16.mxu0 0
  %755 = vmatmul.mubr.bf16.gmra.mrb[0].mxu0 %v717
  %v756 = vpop.f32.mrb[0].mxu0
  %v757 = vadd.f32 0.0, %v756
  %v758 = vpop.f32.mrb[0].mxu0
  %v759 = vpop.f32.mrb[0].mxu0
  %v760 = vadd.f32 0.0, %v759
  %v761 = vpop.f32.mrb[0].mxu0
  %762 = vdwg.mxu0
  %vm763 = vcmask 130048
  %v764 = vsel %vm763, %v428, -inf
  %765 = vmax.xlane.f32.xlu0 %v764
  %v766 = vpop.xlane.xlu0 %765
  %v767 = vsel %vm763, %v431, -inf
  %768 = vmax.xlane.f32.xlu0 %v767
  %v769 = vpop.xlane.xlu0 %768
  %v770 = vsel %vm763, %v475, -inf
  %771 = vmax.xlane.f32.xlu0 %v770
  %v772 = vpop.xlane.xlu0 %771
  %v773 = vsel %vm763, %v478, -inf
  %774 = vmax.xlane.f32.xlu0 %v773
  %v775 = vpop.xlane.xlu0 %774
  %v776 = vsel %vm763, %v522, -inf
  %777 = vmax.xlane.f32.xlu0 %v776
  %v778 = vpop.xlane.xlu0 %777
  %v779 = vsel %vm763, %v525, -inf
  %780 = vmax.xlane.f32.xlu0 %v779
  %v781 = vpop.xlane.xlu0 %780
  %v782 = vsel %vm763, %v569, -inf
  %783 = vmax.xlane.f32.xlu0 %v782
  %v784 = vpop.xlane.xlu0 %783
  %v785 = vsel %vm763, %v572, -inf
  %786 = vmax.xlane.f32.xlu0 %v785
  %v787 = vpop.xlane.xlu0 %786
  %v788 = vsel %vm763, %v616, -inf
  %789 = vmax.xlane.f32.xlu0 %v788
  %v790 = vpop.xlane.xlu0 %789
  %v791 = vsel %vm763, %v619, -inf
  %792 = vmax.xlane.f32.xlu0 %v791
  %v793 = vpop.xlane.xlu0 %792
  %v794 = vsel %vm763, %v663, -inf
  %795 = vmax.xlane.f32.xlu0 %v794
  %v796 = vpop.xlane.xlu0 %795
  %v797 = vsel %vm763, %v666, -inf
  %798 = vmax.xlane.f32.xlu0 %v797
  %v799 = vpop.xlane.xlu0 %798
  %v800 = vsel %vm763, %v710, -inf
  %801 = vmax.xlane.f32.xlu0 %v800
  %v802 = vpop.xlane.xlu0 %801
  %v803 = vsel %vm763, %v713, -inf
  %804 = vmax.xlane.f32.xlu0 %v803
  %v805 = vpop.xlane.xlu0 %804
  %v806 = vsel %vm763, %v757, -inf
  %807 = vmax.xlane.f32.xlu0 %v806
  %v808 = vpop.xlane.xlu0 %807
  %v809 = vsel %vm763, %v760, -inf
  %810 = vmax.xlane.f32.xlu0 %v809
  %v811 = vpop.xlane.xlu0 %810
  %v812 = vsub.f32 %v428, %v766
  %v813 = vsub.f32 %v431, %v769
  %v814 = vsub.f32 %v475, %v772
  %v815 = vsub.f32 %v478, %v775
  %v816 = vsub.f32 %v522, %v778
  %v817 = vsub.f32 %v525, %v781
  %v818 = vsub.f32 %v569, %v784
  %v819 = vsub.f32 %v572, %v787
  %v820 = vsub.f32 %v616, %v790
  %v821 = vsub.f32 %v619, %v793
  %v822 = vsub.f32 %v663, %v796
  %v823 = vsub.f32 %v666, %v799
  %v824 = vsub.f32 %v710, %v802
  %v825 = vsub.f32 %v713, %v805
  %v826 = vsub.f32 %v757, %v808
  %v827 = vsub.f32 %v760, %v811
  %v828 = vmul.f32 %v812, 1.442695
  %v829 = vpow.pop %v828
  %v830 = vmul.f32 %v813, 1.442695
  %v831 = vpow.pop %v830
  %v832 = vmul.f32 %v814, 1.442695
  %v833 = vpow.pop %v832
  %v834 = vmul.f32 %v815, 1.442695
  %v835 = vpow.pop %v834
  %v836 = vmul.f32 %v816, 1.442695
  %v837 = vpow.pop %v836
  %v838 = vmul.f32 %v817, 1.442695
  %v839 = vpow.pop %v838
  %v840 = vmul.f32 %v818, 1.442695
  %v841 = vpow.pop %v840
  %v842 = vmul.f32 %v819, 1.442695
  %v843 = vpow.pop %v842
  %v844 = vmul.f32 %v820, 1.442695
  %v845 = vpow.pop %v844
  %v846 = vmul.f32 %v821, 1.442695
  %v847 = vpow.pop %v846
  %v848 = vmul.f32 %v822, 1.442695
  %v849 = vpow.pop %v848
  %v850 = vmul.f32 %v823, 1.442695
  %v851 = vpow.pop %v850
  %v852 = vmul.f32 %v824, 1.442695
  %v853 = vpow.pop %v852
  %v854 = vmul.f32 %v825, 1.442695
  %v855 = vpow.pop %v854
  %v856 = vmul.f32 %v826, 1.442695
  %v857 = vpow.pop %v856
  %v858 = vmul.f32 %v827, 1.442695
  %v859 = vpow.pop %v858
  %v860 = vsel %vm763, %v829, 0.0
  %861 = vadd.xlane.f32.xlu0 %v860
  %v862 = vpop.xlane.xlu0 %861
  %v863 = vsel %vm763, %v831, 0.0
  %864 = vadd.xlane.f32.xlu0 %v863
  %v865 = vpop.xlane.xlu0 %864
  %v866 = vsel %vm763, %v833, 0.0
  %867 = vadd.xlane.f32.xlu0 %v866
  %v868 = vpop.xlane.xlu0 %867
  %v869 = vsel %vm763, %v835, 0.0
  %870 = vadd.xlane.f32.xlu0 %v869
  %v871 = vpop.xlane.xlu0 %870
  %v872 = vsel %vm763, %v837, 0.0
  %873 = vadd.xlane.f32.xlu0 %v872
  %v874 = vpop.xlane.xlu0 %873
  %v875 = vsel %vm763, %v839, 0.0
  %876 = vadd.xlane.f32.xlu0 %v875
  %v877 = vpop.xlane.xlu0 %876
  %v878 = vsel %vm763, %v841, 0.0
  %879 = vadd.xlane.f32.xlu0 %v878
  %v880 = vpop.xlane.xlu0 %879
  %v881 = vsel %vm763, %v843, 0.0
  %882 = vadd.xlane.f32.xlu0 %v881
  %v883 = vpop.xlane.xlu0 %882
  %v884 = vsel %vm763, %v845, 0.0
  %885 = vadd.xlane.f32.xlu0 %v884
  %v886 = vpop.xlane.xlu0 %885
  %v887 = vsel %vm763, %v847, 0.0
  %888 = vadd.xlane.f32.xlu0 %v887
  %v889 = vpop.xlane.xlu0 %888
  %v890 = vsel %vm763, %v849, 0.0
  %891 = vadd.xlane.f32.xlu0 %v890
  %v892 = vpop.xlane.xlu0 %891
  %v893 = vsel %vm763, %v851, 0.0
  %894 = vadd.xlane.f32.xlu0 %v893
  %v895 = vpop.xlane.xlu0 %894
  %v896 = vsel %vm763, %v853, 0.0
  %897 = vadd.xlane.f32.xlu0 %v896
  %v898 = vpop.xlane.xlu0 %897
  %v899 = vsel %vm763, %v855, 0.0
  %900 = vadd.xlane.f32.xlu0 %v899
  %v901 = vpop.xlane.xlu0 %900
  %v902 = vsel %vm763, %v857, 0.0
  %903 = vadd.xlane.f32.xlu0 %v902
  %v904 = vpop.xlane.xlu0 %903
  %v905 = vsel %vm763, %v859, 0.0
  %906 = vadd.xlane.f32.xlu0 %v905
  %v907 = vpop.xlane.xlu0 %906
  %v908 = vpack.c.bf16 %v831, %v829
  %v909 = vpack.c.bf16 %v835, %v833
  %v910 = vpack.c.bf16 %v839, %v837
  %v911 = vpack.c.bf16 %v843, %v841
  %v912 = vpack.c.bf16 %v847, %v845
  %v913 = vpack.c.bf16 %v851, %v849
  %v914 = vpack.c.bf16 %v855, %v853
  %v915 = vpack.c.bf16 %v859, %v857
  %v917 = vsel %vm763, %v908, 0
  %919 = vmatprep.subr.bf16.mxu0 0
  %920 = vmatpush1.bf16.msra.mxu0 %v336
  %921 = vmatprep.subr.bf16.mxu0 0
  %922 = vmatpush1.bf16.msra.mxu0 0
  %923 = vmatprep.subr.bf16.mxu0 0
  %924 = vmatpush1.bf16.msra.mxu0 0
  %925 = vmatprep.subr.bf16.mxu0 0
  %926 = vmatpush1.bf16.msra.mxu0 0
  %927 = vmatprep.subr.bf16.mxu0 0
  %928 = vmatpush1.bf16.msra.mxu0 0
  %929 = vmatprep.subr.bf16.mxu0 0
  %930 = vmatpush1.bf16.msra.mxu0 0
  %931 = vmatprep.subr.bf16.mxu0 0
  %932 = vmatpush1.bf16.msra.mxu0 0
  %933 = vmatprep.subr.bf16.mxu0 0
  %934 = vmatpush1.bf16.msra.mxu0 0
  %935 = vmatprep.subr.bf16.mxu0 0
  %936 = vmatpush1.bf16.msra.mxu0 0
  %937 = vmatprep.subr.bf16.mxu0 0
  %938 = vmatpush1.bf16.msra.mxu0 0
  %939 = vmatprep.subr.bf16.mxu0 0
  %940 = vmatpush1.bf16.msra.mxu0 0
  %941 = vmatprep.subr.bf16.mxu0 0
  %942 = vmatpush1.bf16.msra.mxu0 0
  %943 = vmatprep.subr.bf16.mxu0 0
  %944 = vmatpush1.bf16.msra.mxu0 0
  %945 = vmatprep.subr.bf16.mxu0 0
  %946 = vmatpush1.bf16.msra.mxu0 0
  %947 = vmatprep.subr.bf16.mxu0 0
  %948 = vmatpush1.bf16.msra.mxu0 0
  %949 = vmatprep.subr.bf16.mxu0 0
  %950 = vmatpush1.bf16.msra.mxu0 0
  %951 = vmatprep.mubr.bf16.mxu0 0
  %952 = vmatmul.mubr.bf16.gmra.mrb[0].mxu0 %v917
  %v953 = vpop.f32.mrb[0].mxu0
  %v954 = vadd.f32 0.0, %v953
  %v955 = vpop.f32.mrb[0].mxu0
  %v956 = vpop.f32.mrb[0].mxu0
  %v957 = vadd.f32 0.0, %v956
  %v958 = vpop.f32.mrb[0].mxu0
  %959 = vdwg.mxu0
  %v961 = vsel %vm763, %v909, 0
  %963 = vmatprep.subr.bf16.mxu0 0
  %964 = vmatpush1.bf16.msra.mxu0 %v337
  %965 = vmatprep.subr.bf16.mxu0 0
  %966 = vmatpush1.bf16.msra.mxu0 0
  %967 = vmatprep.subr.bf16.mxu0 0
  %968 = vmatpush1.bf16.msra.mxu0 0
  %969 = vmatprep.subr.bf16.mxu0 0
  %970 = vmatpush1.bf16.msra.mxu0 0
  %971 = vmatprep.subr.bf16.mxu0 0
  %972 = vmatpush1.bf16.msra.mxu0 0
  %973 = vmatprep.subr.bf16.mxu0 0
  %974 = vmatpush1.bf16.msra.mxu0 0
  %975 = vmatprep.subr.bf16.mxu0 0
  %976 = vmatpush1.bf16.msra.mxu0 0
  %977 = vmatprep.subr.bf16.mxu0 0
  %978 = vmatpush1.bf16.msra.mxu0 0
  %979 = vmatprep.subr.bf16.mxu0 0
  %980 = vmatpush1.bf16.msra.mxu0 0
  %981 = vmatprep.subr.bf16.mxu0 0
  %982 = vmatpush1.bf16.msra.mxu0 0
  %983 = vmatprep.subr.bf16.mxu0 0
  %984 = vmatpush1.bf16.msra.mxu0 0
  %985 = vmatprep.subr.bf16.mxu0 0
  %986 = vmatpush1.bf16.msra.mxu0 0
  %987 = vmatprep.subr.bf16.mxu0 0
  %988 = vmatpush1.bf16.msra.mxu0 0
  %989 = vmatprep.subr.bf16.mxu0 0
  %990 = vmatpush1.bf16.msra.mxu0 0
  %991 = vmatprep.subr.bf16.mxu0 0
  %992 = vmatpush1.bf16.msra.mxu0 0
  %993 = vmatprep.subr.bf16.mxu0 0
  %994 = vmatpush1.bf16.msra.mxu0 0
  %995 = vmatprep.mubr.bf16.mxu0 0
  %996 = vmatmul.mubr.bf16.gmra.mrb[0].mxu0 %v961
  %v997 = vpop.f32.mrb[0].mxu0
  %v998 = vadd.f32 0.0, %v997
  %v999 = vpop.f32.mrb[0].mxu0
  %v1000 = vpop.f32.mrb[0].mxu0
  %v1001 = vadd.f32 0.0, %v1000
  %v1002 = vpop.f32.mrb[0].mxu0
  %1003 = vdwg.mxu0
  %v1005 = vsel %vm763, %v910, 0
  %1007 = vmatprep.subr.bf16.mxu0 0
  %1008 = vmatpush1.bf16.msra.mxu0 %v369
  %1009 = vmatprep.subr.bf16.mxu0 0
  %1010 = vmatpush1.bf16.msra.mxu0 0
  %1011 = vmatprep.subr.bf16.mxu0 0
  %1012 = vmatpush1.bf16.msra.mxu0 0
  %1013 = vmatprep.subr.bf16.mxu0 0
  %1014 = vmatpush1.bf16.msra.mxu0 0
  %1015 = vmatprep.subr.bf16.mxu0 0
  %1016 = vmatpush1.bf16.msra.mxu0 0
  %1017 = vmatprep.subr.bf16.mxu0 0
  %1018 = vmatpush1.bf16.msra.mxu0 0
  %1019 = vmatprep.subr.bf16.mxu0 0
  %1020 = vmatpush1.bf16.msra.mxu0 0
  %1021 = vmatprep.subr.bf16.mxu0 0
  %1022 = vmatpush1.bf16.msra.mxu0 0
  %1023 = vmatprep.subr.bf16.mxu0 0
  %1024 = vmatpush1.bf16.msra.mxu0 0
  %1025 = vmatprep.subr.bf16.mxu0 0
  %1026 = vmatpush1.bf16.msra.mxu0 0
  %1027 = vmatprep.subr.bf16.mxu0 0
  %1028 = vmatpush1.bf16.msra.mxu0 0
  %1029 = vmatprep.subr.bf16.mxu0 0
  %1030 = vmatpush1.bf16.msra.mxu0 0
  %1031 = vmatprep.subr.bf16.mxu0 0
  %1032 = vmatpush1.bf16.msra.mxu0 0
  %1033 = vmatprep.subr.bf16.mxu0 0
  %1034 = vmatpush1.bf16.msra.mxu0 0
  %1035 = vmatprep.subr.bf16.mxu0 0
  %1036 = vmatpush1.bf16.msra.mxu0 0
  %1037 = vmatprep.subr.bf16.mxu0 0
  %1038 = vmatpush1.bf16.msra.mxu0 0
  %1039 = vmatprep.mubr.bf16.mxu0 0
  %1040 = vmatmul.mubr.bf16.gmra.mrb[0].mxu0 %v1005
  %v1041 = vpop.f32.mrb[0].mxu0
  %v1042 = vadd.f32 0.0, %v1041
  %v1043 = vpop.f32.mrb[0].mxu0
  %v1044 = vpop.f32.mrb[0].mxu0
  %v1045 = vadd.f32 0.0, %v1044
  %v1046 = vpop.f32.mrb[0].mxu0
  %1047 = vdwg.mxu0
  %v1049 = vsel %vm763, %v911, 0
  %1051 = vmatprep.subr.bf16.mxu0 0
  %1052 = vmatpush1.bf16.msra.mxu0 %v371
  %1053 = vmatprep.subr.bf16.mxu0 0
  %1054 = vmatpush1.bf16.msra.mxu0 0
  %1055 = vmatprep.subr.bf16.mxu0 0
  %1056 = vmatpush1.bf16.msra.mxu0 0
  %1057 = vmatprep.subr.bf16.mxu0 0
  %1058 = vmatpush1.bf16.msra.mxu0 0
  %1059 = vmatprep.subr.bf16.mxu0 0
  %1060 = vmatpush1.bf16.msra.mxu0 0
  %1061 = vmatprep.subr.bf16.mxu0 0
  %1062 = vmatpush1.bf16.msra.mxu0 0
  %1063 = vmatprep.subr.bf16.mxu0 0
  %1064 = vmatpush1.bf16.msra.mxu0 0
  %1065 = vmatprep.subr.bf16.mxu0 0
  %1066 = vmatpush1.bf16.msra.mxu0 0
  %1067 = vmatprep.subr.bf16.mxu0 0
  %1068 = vmatpush1.bf16.msra.mxu0 0
  %1069 = vmatprep.subr.bf16.mxu0 0
  %1070 = vmatpush1.bf16.msra.mxu0 0
  %1071 = vmatprep.subr.bf16.mxu0 0
  %1072 = vmatpush1.bf16.msra.mxu0 0
  %1073 = vmatprep.subr.bf16.mxu0 0
  %1074 = vmatpush1.bf16.msra.mxu0 0
  %1075 = vmatprep.subr.bf16.mxu0 0
  %1076 = vmatpush1.bf16.msra.mxu0 0
  %1077 = vmatprep.subr.bf16.mxu0 0
  %1078 = vmatpush1.bf16.msra.mxu0 0
  %1079 = vmatprep.subr.bf16.mxu0 0
  %1080 = vmatpush1.bf16.msra.mxu0 0
  %1081 = vmatprep.subr.bf16.mxu0 0
  %1082 = vmatpush1.bf16.msra.mxu0 0
  %1083 = vmatprep.mubr.bf16.mxu0 0
  %1084 = vmatmul.mubr.bf16.gmra.mrb[0].mxu0 %v1049
  %v1085 = vpop.f32.mrb[0].mxu0
  %v1086 = vadd.f32 0.0, %v1085
  %v1087 = vpop.f32.mrb[0].mxu0
  %v1088 = vpop.f32.mrb[0].mxu0
  %v1089 = vadd.f32 0.0, %v1088
  %v1090 = vpop.f32.mrb[0].mxu0
  %1091 = vdwg.mxu0
  %v1093 = vsel %vm763, %v912, 0
  %1095 = vmatprep.subr.bf16.mxu0 0
  %1096 = vmatpush1.bf16.msra.mxu0 %v375
  %1097 = vmatprep.subr.bf16.mxu0 0
  %1098 = vmatpush1.bf16.msra.mxu0 0
  %1099 = vmatprep.subr.bf16.mxu0 0
  %1100 = vmatpush1.bf16.msra.mxu0 0
  %1101 = vmatprep.subr.bf16.mxu0 0
  %1102 = vmatpush1.bf16.msra.mxu0 0
  %1103 = vmatprep.subr.bf16.mxu0 0
  %1104 = vmatpush1.bf16.msra.mxu0 0
  %1105 = vmatprep.subr.bf16.mxu0 0
  %1106 = vmatpush1.bf16.msra.mxu0 0
  %1107 = vmatprep.subr.bf16.mxu0 0
  %1108 = vmatpush1.bf16.msra.mxu0 0
  %1109 = vmatprep.subr.bf16.mxu0 0
  %1110 = vmatpush1.bf16.msra.mxu0 0
  %1111 = vmatprep.subr.bf16.mxu0 0
  %1112 = vmatpush1.bf16.msra.mxu0 0
  %1113 = vmatprep.subr.bf16.mxu0 0
  %1114 = vmatpush1.bf16.msra.mxu0 0
  %1115 = vmatprep.subr.bf16.mxu0 0
  %1116 = vmatpush1.bf16.msra.mxu0 0
  %1117 = vmatprep.subr.bf16.mxu0 0
  %1118 = vmatpush1.bf16.msra.mxu0 0
  %1119 = vmatprep.subr.bf16.mxu0 0
  %1120 = vmatpush1.bf16.msra.mxu0 0
  %1121 = vmatprep.subr.bf16.mxu0 0
  %1122 = vmatpush1.bf16.msra.mxu0 0
  %1123 = vmatprep.subr.bf16.mxu0 0
  %1124 = vmatpush1.bf16.msra.mxu0 0
  %1125 = vmatprep.subr.bf16.mxu0 0
  %1126 = vmatpush1.bf16.msra.mxu0 0
  %1127 = vmatprep.mubr.bf16.mxu0 0
  %1128 = vmatmul.mubr.bf16.gmra.mrb[0].mxu0 %v1093
  %v1129 = vpop.f32.mrb[0].mxu0
  %v1130 = vadd.f32 0.0, %v1129
  %v1131 = vpop.f32.mrb[0].mxu0
  %v1132 = vpop.f32.mrb[0].mxu0
  %v1133 = vadd.f32 0.0, %v1132
  %v1134 = vpop.f32.mrb[0].mxu0
  %1135 = vdwg.mxu0
  %v1137 = vsel %vm763, %v913, 0
  %1139 = vmatprep.subr.bf16.mxu0 0
  %1140 = vmatpush1.bf16.msra.mxu0 %v377
  %1141 = vmatprep.subr.bf16.mxu0 0
  %1142 = vmatpush1.bf16.msra.mxu0 0
  %1143 = vmatprep.subr.bf16.mxu0 0
  %1144 = vmatpush1.bf16.msra.mxu0 0
  %1145 = vmatprep.subr.bf16.mxu0 0
  %1146 = vmatpush1.bf16.msra.mxu0 0
  %1147 = vmatprep.subr.bf16.mxu0 0
  %1148 = vmatpush1.bf16.msra.mxu0 0
  %1149 = vmatprep.subr.bf16.mxu0 0
  %1150 = vmatpush1.bf16.msra.mxu0 0
  %1151 = vmatprep.subr.bf16.mxu0 0
  %1152 = vmatpush1.bf16.msra.mxu0 0
  %1153 = vmatprep.subr.bf16.mxu0 0
  %1154 = vmatpush1.bf16.msra.mxu0 0
  %1155 = vmatprep.subr.bf16.mxu0 0
  %1156 = vmatpush1.bf16.msra.mxu0 0
  %1157 = vmatprep.subr.bf16.mxu0 0
  %1158 = vmatpush1.bf16.msra.mxu0 0
  %1159 = vmatprep.subr.bf16.mxu0 0
  %1160 = vmatpush1.bf16.msra.mxu0 0
  %1161 = vmatprep.subr.bf16.mxu0 0
  %1162 = vmatpush1.bf16.msra.mxu0 0
  %1163 = vmatprep.subr.bf16.mxu0 0
  %1164 = vmatpush1.bf16.msra.mxu0 0
  %1165 = vmatprep.subr.bf16.mxu0 0
  %1166 = vmatpush1.bf16.msra.mxu0 0
  %1167 = vmatprep.subr.bf16.mxu0 0
  %1168 = vmatpush1.bf16.msra.mxu0 0
  %1169 = vmatprep.subr.bf16.mxu0 0
  %1170 = vmatpush1.bf16.msra.mxu0 0
  %1171 = vmatprep.mubr.bf16.mxu0 0
  %1172 = vmatmul.mubr.bf16.gmra.mrb[0].mxu0 %v1137
  %v1173 = vpop.f32.mrb[0].mxu0
  %v1174 = vadd.f32 0.0, %v1173
  %v1175 = vpop.f32.mrb[0].mxu0
  %v1176 = vpop.f32.mrb[0].mxu0
  %v1177 = vadd.f32 0.0, %v1176
  %v1178 = vpop.f32.mrb[0].mxu0
  %1179 = vdwg.mxu0
  %v1181 = vsel %vm763, %v914, 0
  %1183 = vmatprep.subr.bf16.mxu0 0
  %1184 = vmatpush1.bf16.msra.mxu0 %v381
  %1185 = vmatprep.subr.bf16.mxu0 0
  %1186 = vmatpush1.bf16.msra.mxu0 0
  %1187 = vmatprep.subr.bf16.mxu0 0
  %1188 = vmatpush1.bf16.msra.mxu0 0
  %1189 = vmatprep.subr.bf16.mxu0 0
  %1190 = vmatpush1.bf16.msra.mxu0 0
  %1191 = vmatprep.subr.bf16.mxu0 0
  %1192 = vmatpush1.bf16.msra.mxu0 0
  %1193 = vmatprep.subr.bf16.mxu0 0
  %1194 = vmatpush1.bf16.msra.mxu0 0
  %1195 = vmatprep.subr.bf16.mxu0 0
  %1196 = vmatpush1.bf16.msra.mxu0 0
  %1197 = vmatprep.subr.bf16.mxu0 0
  %1198 = vmatpush1.bf16.msra.mxu0 0
  %1199 = vmatprep.subr.bf16.mxu0 0
  %1200 = vmatpush1.bf16.msra.mxu0 0
  %1201 = vmatprep.subr.bf16.mxu0 0
  %1202 = vmatpush1.bf16.msra.mxu0 0
  %1203 = vmatprep.subr.bf16.mxu0 0
  %1204 = vmatpush1.bf16.msra.mxu0 0
  %1205 = vmatprep.subr.bf16.mxu0 0
  %1206 = vmatpush1.bf16.msra.mxu0 0
  %1207 = vmatprep.subr.bf16.mxu0 0
  %1208 = vmatpush1.bf16.msra.mxu0 0
  %1209 = vmatprep.subr.bf16.mxu0 0
  %1210 = vmatpush1.bf16.msra.mxu0 0
  %1211 = vmatprep.subr.bf16.mxu0 0
  %1212 = vmatpush1.bf16.msra.mxu0 0
  %1213 = vmatprep.subr.bf16.mxu0 0
  %1214 = vmatpush1.bf16.msra.mxu0 0
  %1215 = vmatprep.mubr.bf16.mxu0 0
  %1216 = vmatmul.mubr.bf16.gmra.mrb[0].mxu0 %v1181
  %v1217 = vpop.f32.mrb[0].mxu0
  %v1218 = vadd.f32 0.0, %v1217
  %v1219 = vpop.f32.mrb[0].mxu0
  %v1220 = vpop.f32.mrb[0].mxu0
  %v1221 = vadd.f32 0.0, %v1220
  %v1222 = vpop.f32.mrb[0].mxu0
  %1223 = vdwg.mxu0
  %v1225 = vsel %vm763, %v915, 0
  %1227 = vmatprep.subr.bf16.mxu0 0
  %1228 = vmatpush1.bf16.msra.mxu0 %v383
  %1229 = vmatprep.subr.bf16.mxu0 0
  %1230 = vmatpush1.bf16.msra.mxu0 0
  %1231 = vmatprep.subr.bf16.mxu0 0
  %1232 = vmatpush1.bf16.msra.mxu0 0
  %1233 = vmatprep.subr.bf16.mxu0 0
  %1234 = vmatpush1.bf16.msra.mxu0 0
  %1235 = vmatprep.subr.bf16.mxu0 0
  %1236 = vmatpush1.bf16.msra.mxu0 0
  %1237 = vmatprep.subr.bf16.mxu0 0
  %1238 = vmatpush1.bf16.msra.mxu0 0
  %1239 = vmatprep.subr.bf16.mxu0 0
  %1240 = vmatpush1.bf16.msra.mxu0 0
  %1241 = vmatprep.subr.bf16.mxu0 0
  %1242 = vmatpush1.bf16.msra.mxu0 0
  %1243 = vmatprep.subr.bf16.mxu0 0
  %1244 = vmatpush1.bf16.msra.mxu0 0
  %1245 = vmatprep.subr.bf16.mxu0 0
  %1246 = vmatpush1.bf16.msra.mxu0 0
  %1247 = vmatprep.subr.bf16.mxu0 0
  %1248 = vmatpush1.bf16.msra.mxu0 0
  %1249 = vmatprep.subr.bf16.mxu0 0
  %1250 = vmatpush1.bf16.msra.mxu0 0
  %1251 = vmatprep.subr.bf16.mxu0 0
  %1252 = vmatpush1.bf16.msra.mxu0 0
  %1253 = vmatprep.subr.bf16.mxu0 0
  %1254 = vmatpush1.bf16.msra.mxu0 0
  %1255 = vmatprep.subr.bf16.mxu0 0
  %1256 = vmatpush1.bf16.msra.mxu0 0
  %1257 = vmatprep.subr.bf16.mxu0 0
  %1258 = vmatpush1.bf16.msra.mxu0 0
  %1259 = vmatprep.mubr.bf16.mxu0 0
  %1260 = vmatmul.mubr.bf16.gmra.mrb[0].mxu0 %v1225
  %v1261 = vpop.f32.mrb[0].mxu0
  %v1262 = vadd.f32 0.0, %v1261
  %v1263 = vpop.f32.mrb[0].mxu0
  %v1264 = vpop.f32.mrb[0].mxu0
  %v1265 = vadd.f32 0.0, %v1264
  %v1266 = vpop.f32.mrb[0].mxu0
  %1267 = vdwg.mxu0
  %v1268 = vrcp.pop %v862
  %v1269 = vrcp.pop %v865
  %v1270 = vrcp.pop %v868
  %v1271 = vrcp.pop %v871
  %v1272 = vrcp.pop %v874
  %v1273 = vrcp.pop %v877
  %v1274 = vrcp.pop %v880
  %v1275 = vrcp.pop %v883
  %v1276 = vrcp.pop %v886
  %v1277 = vrcp.pop %v889
  %v1278 = vrcp.pop %v892
  %v1279 = vrcp.pop %v895
  %v1280 = vrcp.pop %v898
  %v1281 = vrcp.pop %v901
  %v1282 = vrcp.pop %v904
  %v1283 = vrcp.pop %v907
  %v1284 = vmul.f32 %v954, %v1268
  %v1285 = vmul.f32 %v957, %v1269
  %v1286 = vmul.f32 %v998, %v1270
  %v1287 = vmul.f32 %v1001, %v1271
  %v1288 = vmul.f32 %v1042, %v1272
  %v1289 = vmul.f32 %v1045, %v1273
  %v1290 = vmul.f32 %v1086, %v1274
  %v1291 = vmul.f32 %v1089, %v1275
  %v1292 = vmul.f32 %v1130, %v1276
  %v1293 = vmul.f32 %v1133, %v1277
  %v1294 = vmul.f32 %v1174, %v1278
  %v1295 = vmul.f32 %v1177, %v1279
  %v1296 = vmul.f32 %v1218, %v1280
  %v1297 = vmul.f32 %v1221, %v1281
  %v1298 = vmul.f32 %v1262, %v1282
  %v1299 = vmul.f32 %v1265, %v1283
  %1304 = vrot.lane.b32.xlu0 %v1288, 32
  %v1305 = vpop.permute.xlu0 %1304
  %1306 = vrot.lane.b32.xlu0 %v1289, 32
  %v1307 = vpop.permute.xlu0 %1306
  %1308 = vrot.lane.b32.xlu0 %v1290, 32
  %v1309 = vpop.permute.xlu0 %1308
  %1310 = vrot.lane.b32.xlu0 %v1291, 32
  %v1311 = vpop.permute.xlu0 %1310
  %1320 = vrot.lane.b32.xlu0 %v1292, 64
  %v1321 = vpop.permute.xlu0 %1320
  %1322 = vrot.lane.b32.xlu0 %v1293, 64
  %v1323 = vpop.permute.xlu0 %1322
  %1324 = vrot.lane.b32.xlu0 %v1294, 64
  %v1325 = vpop.permute.xlu0 %1324
  %1326 = vrot.lane.b32.xlu0 %v1295, 64
  %v1327 = vpop.permute.xlu0 %1326
  %1336 = vrot.lane.b32.xlu0 %v1296, 96
  %v1337 = vpop.permute.xlu0 %1336
  %1338 = vrot.lane.b32.xlu0 %v1297, 96
  %v1339 = vpop.permute.xlu0 %1338
  %1340 = vrot.lane.b32.xlu0 %v1298, 96
  %v1341 = vpop.permute.xlu0 %1340
  %1342 = vrot.lane.b32.xlu0 %v1299, 96
  %v1343 = vpop.permute.xlu0 %1342
  %v1348 = vsel %vm386, %v1284, %v1305
  %v1349 = vsel %vm386, %v1285, %v1307
  %v1350 = vsel %vm386, %v1286, %v1309
  %v1351 = vsel %vm386, %v1287, %v1311
  %vm1352 = vcmask 523264
  %v1353 = vsel %vm1352, %v1348, %v1321
  %v1354 = vsel %vm1352, %v1349, %v1323
  %v1355 = vsel %vm1352, %v1350, %v1325
  %v1356 = vsel %vm1352, %v1351, %v1327
  %vm1357 = vcmask 785408
  %v1358 = vsel %vm1357, %v1353, %v1337
  %v1359 = vsel %vm1357, %v1354, %v1339
  %v1360 = vsel %vm1357, %v1355, %v1341
  %v1361 = vsel %vm1357, %v1356, %v1343
  %v1362 = vpack.c.bf16 %v1359, %v1358
  %v1363 = vpack.c.bf16 %v1361, %v1360
  %v1364 = vld [vmem:[%s3] sm:$0xf]
  %v1365 = vld [vmem:[%s3 + $0x4] sm:$0xf]
  %v1366 = vld [vmem:[%s3 + $0x8] sm:$0xf]
  %v1367 = vld [vmem:[%s3 + $0xc] sm:$0xf]
  %v1368 = vld [vmem:[%s3 + $0x10] sm:$0xf]
  %v1369 = vld [vmem:[%s3 + $0x14] sm:$0xf]
  %v1370 = vld [vmem:[%s3 + $0x18] sm:$0xf]
  %v1371 = vld [vmem:[%s3 + $0x1c] sm:$0xf]
  %v1372 = vld [vmem:[%s3 + $0x20] sm:$0xf]
  %v1373 = vld [vmem:[%s3 + $0x24] sm:$0xf]
  %v1374 = vld [vmem:[%s3 + $0x28] sm:$0xf]
  %v1375 = vld [vmem:[%s3 + $0x2c] sm:$0xf]
  %v1376 = vld [vmem:[%s3 + $0x30] sm:$0xf]
  %v1377 = vld [vmem:[%s3 + $0x34] sm:$0xf]
  %v1378 = vld [vmem:[%s3 + $0x38] sm:$0xf]
  %v1379 = vld [vmem:[%s3 + $0x3c] sm:$0xf]
  %v1380 = vld [vmem:[%s4] sm:$0x1]
  %v1382 = vlaneseq
  %v1383 = vshrl.u32 %v1382, 7
  %v1384 = vsub.s32 0, %v1383
  %v1385 = vrot.slane %v1380, %v1384
  %v1403 = vunpack.c.l.b16 %v1364
  %v1404 = vunpack.c.l.b16 %v1365
  %v1405 = vunpack.c.l.b16 %v1366
  %v1406 = vunpack.c.l.b16 %v1367
  %v1407 = vunpack.c.l.b16 %v1368
  %v1408 = vunpack.c.l.b16 %v1369
  %v1409 = vunpack.c.l.b16 %v1370
  %v1410 = vunpack.c.l.b16 %v1371
  %v1411 = vunpack.c.l.b16 %v1372
  %v1412 = vunpack.c.l.b16 %v1373
  %v1413 = vunpack.c.l.b16 %v1374
  %v1414 = vunpack.c.l.b16 %v1375
  %v1415 = vunpack.c.l.b16 %v1376
  %v1416 = vunpack.c.l.b16 %v1377
  %v1417 = vunpack.c.l.b16 %v1378
  %v1418 = vunpack.c.l.b16 %v1379
  %v1419 = vpack.c.b16 %v1404, %v1403
  %v1420 = vpack.c.b16 %v1406, %v1405
  %v1421 = vpack.c.b16 %v1408, %v1407
  %v1422 = vpack.c.b16 %v1410, %v1409
  %v1423 = vpack.c.b16 %v1412, %v1411
  %v1424 = vpack.c.b16 %v1414, %v1413
  %v1425 = vpack.c.b16 %v1416, %v1415
  %v1426 = vpack.c.b16 %v1418, %v1417
  %1435 = vmatprep.subr.bf16.mxu0 0
  %1436 = vmatpush1.bf16.msra.mxu0 %v1419
  %1437 = vmatprep.subr.bf16.mxu0 0
  %1438 = vmatpush1.bf16.msra.mxu0 %v1420
  %1439 = vmatprep.subr.bf16.mxu0 0
  %1440 = vmatpush1.bf16.msra.mxu0 %v1421
  %1441 = vmatprep.subr.bf16.mxu0 0
  %1442 = vmatpush1.bf16.msra.mxu0 %v1422
  %1443 = vmatprep.subr.bf16.mxu0 0
  %1444 = vmatpush1.bf16.msra.mxu0 %v1423
  %1445 = vmatprep.subr.bf16.mxu0 0
  %1446 = vmatpush1.bf16.msra.mxu0 %v1424
  %1447 = vmatprep.subr.bf16.mxu0 0
  %1448 = vmatpush1.bf16.msra.mxu0 %v1425
  %1449 = vmatprep.subr.bf16.mxu0 0
  %1450 = vmatpush1.bf16.msra.mxu0 %v1426
  %1451 = vmatprep.subr.bf16.mxu0 0
  %1452 = vmatpush1.bf16.msra.mxu0 0
  %1453 = vmatprep.subr.bf16.mxu0 0
  %1454 = vmatpush1.bf16.msra.mxu0 0
  %1455 = vmatprep.subr.bf16.mxu0 0
  %1456 = vmatpush1.bf16.msra.mxu0 0
  %1457 = vmatprep.subr.bf16.mxu0 0
  %1458 = vmatpush1.bf16.msra.mxu0 0
  %1459 = vmatprep.subr.bf16.mxu0 0
  %1460 = vmatpush1.bf16.msra.mxu0 0
  %1461 = vmatprep.subr.bf16.mxu0 0
  %1462 = vmatpush1.bf16.msra.mxu0 0
  %1463 = vmatprep.subr.bf16.mxu0 0
  %1464 = vmatpush1.bf16.msra.mxu0 0
  %1465 = vmatprep.subr.bf16.mxu0 0
  %1466 = vmatpush1.bf16.msra.mxu0 0
  %1467 = vmatprep.mubr.bf16.mxu0 0
  %1468 = vmatmul.mubr.bf16.gmra.mrb[0].mxu0 %v1362
  %v1469 = vpop.f32.mrb[0].mxu0
  %v1470 = vadd.f32 %v1385, %v1469
  %v1471 = vpop.f32.mrb[0].mxu0
  %v1472 = vpop.f32.mrb[0].mxu0
  %v1473 = vadd.f32 %v1385, %v1472
  %v1474 = vpop.f32.mrb[0].mxu0
  %1475 = vmatprep.mubr.bf16.mxu0 0
  %1476 = vmatmul.mubr.bf16.gmra.mrb[0].mxu0 %v1363
  %v1477 = vpop.f32.mrb[0].mxu0
  %v1478 = vadd.f32 %v1385, %v1477
  %v1479 = vpop.f32.mrb[0].mxu0
  %v1480 = vpop.f32.mrb[0].mxu0
  %v1481 = vadd.f32 %v1385, %v1480
  %v1482 = vpop.f32.mrb[0].mxu0
  %1483 = vdwg.mxu0
  %v1484 = vmax.f32 %v1470, 0.0
  %v1485 = vmax.f32 %v1473, 0.0
  %v1486 = vmax.f32 %v1478, 0.0
  %v1487 = vmax.f32 %v1481, 0.0
  %1488 = vst [vmem:[%s5] sm:$0xff] %v1484
  %1489 = vst [vmem:[%s5 + $0x8] sm:$0xff] %v1485
  %1490 = vst [vmem:[%s5 + $0x10] sm:$0xff] %v1486
  %1491 = vst [vmem:[%s5 + $0x18] sm:$0xff] %v1487
  // Predicated region
  $region22: #{self_transformer_forward.2} parent=0 // pred_check
    _
  $region23: #{self_transformer_forward.2} parent=0 // pred_check_branch
    %1493 = sbr.rel (0) target = $region25
  $region24: #{self_transformer_forward.2} parent=0 // pred_region
    _
  $region25: #{self_transformer_forward.2} parent=0 // pred_fallthru
    _
  // Predicated region
  $region26: #{self_transformer_forward.2} parent=0 // pred_check
    _
  $region27: #{self_transformer_forward.2} parent=0 // pred_check_branch
    %1495 = sbr.rel (0) target = $region29
  $region28: #{self_transformer_forward.2} parent=0 // pred_region
    _
  $region29: #{self_transformer_forward.2} parent=0 // pred_fallthru
    _

</llo_original>
